<compile_context>
chip_gen: v7x
topology: tpu7x:2x2x1
jax: 0.10.0
libtpu: 0.0.40
codegen_flags: <defaults>
</compile_context>

<pallas_src>
import functools

import jax
import jax.numpy as jnp
from jax.experimental import pallas as pl
from jax.experimental.pallas import tpu as pltpu

FEATS = [29, 22, 15, 10, 22, 29]    # layer in/out sizes
NUM_LAYERS = 5
F_IN, F_OUT = FEATS[0], FEATS[-1]
PAD = 32                            # per-layer feature padding (>= 29, mult of 8)
ONE_ROW = PAD - 1                   # padded feature row pinned to 1.0 (bias carrier)
G = 8                               # batch fold factor: 8 * 32 = 256 = MXU width (v6e/v7x)
DPAD = G * PAD                      # 256
ALIGN_MIN = G * 8                   # minimal batch-tile granularity (aligned slices)
ALIGN_PREF = G * 128                # preferred granularity (folded sub-tile lane-dense)


def _round_up(x, m):
    return (x + m - 1) // m * m


def _cdiv(a, b):
    return (a + b - 1) // b


def autoencoder_kernel(x_ref, w_ref, o_ref):
    # x_ref: [TB, 29]        native PyTorch layout (batch on sublanes)
    # w_ref: [5, 256, 256]   block-diagonal, zero-padded, bias folded into col 31
    # o_ref: [TB, 29]
    tb = x_ref.shape[0]
    tbg = tb // G
    xb = x_ref[...]

    # Fold the batch tile onto sublanes: [TB, 29] -> [256, TB/8].
    # Per group g (batch rows g*tbg .. (g+1)*tbg): pad features 29->32 with the
    # bias-carrier row set to 1, transpose to [32, tbg], stack along sublanes.
    zeros = jnp.zeros((tbg, PAD - F_IN - 1), xb.dtype)
    ones = jnp.ones((tbg, 1), xb.dtype)
    pieces = []
    for g in range(G):                                   # static unroll
        xg = jnp.concatenate(
            [xb[g * tbg:(g + 1) * tbg, :], zeros, ones], axis=1)   # [tbg, 32]
        pieces.append(xg.T)                              # [32, tbg]
    h = jnp.concatenate(pieces, axis=0)                  # [256, tbg]

    # 5x (block-diagonal matmul + ReLU). The bias rides along via the ones row;
    # padded feature rows stay exactly 0 and the ones row stays exactly 1, so
    # the folded computation matches the unpadded reference exactly.
    for l in range(NUM_LAYERS):                          # static unroll: 5 MXU matmuls
        w = w_ref[l]                                     # [256, 256]
        h = jnp.maximum(
            jnp.dot(w, h.astype(w.dtype), preferred_element_type=jnp.float32),
            0.0)

    # Unfold back to the native [TB, 29] layout and store.
    outs = []
    for g in range(G):
        outs.append(h[g * PAD:(g + 1) * PAD, :].T)       # [tbg, 32]
    o_ref[...] = jnp.concatenate(outs, axis=0)[:, :F_OUT].astype(o_ref.dtype)


def pack_params(params, dot_dtype=jnp.float32):
    """params: list of (W [out,in], b [out]) in PyTorch layout -> block-diag slab.

    Layout of each 32x32 diagonal block for layer l:
      [:out, :in]        = W_l
      [:out, ONE_ROW]    = b_l   (bias, multiplied by the always-1 activation row)
      [ONE_ROW, ONE_ROW] = 1.0   (keeps the ones row alive across layers)
      everything else    = 0     (padded feature rows stay exactly 0)
    """
    w_all = jnp.zeros((NUM_LAYERS, DPAD, DPAD), jnp.float32)
    for l, (w, b) in enumerate(params):
        out_d, in_d = w.shape
        blk = jnp.zeros((PAD, PAD), jnp.float32)
        blk = blk.at[:out_d, :in_d].set(w.astype(jnp.float32))
        blk = blk.at[:out_d, ONE_ROW].set(b.astype(jnp.float32))
        blk = blk.at[ONE_ROW, ONE_ROW].set(1.0)
        for g in range(G):
            w_all = w_all.at[l, g * PAD:(g + 1) * PAD, g * PAD:(g + 1) * PAD].set(blk)
    return w_all.astype(dot_dtype)


def _choose_tiles(batch, tb_max):
    """Pick (TB, Bp): near-equal aligned tiles; >=2 grid steps for large batches."""
    batch = max(batch, 1)
    if batch <= 2 * ALIGN_PREF:
        tb = _round_up(batch, ALIGN_MIN)        # single small tile, minimal padding
        return tb, tb
    chunks = _cdiv(batch, ALIGN_PREF)
    best = None
    for tc in range(1, max(1, tb_max // ALIGN_PREF) + 1):
        nt = _cdiv(chunks, tc)
        if nt < 2:      # keep >=2 grid steps so v7x megacore can split the batch
            break
        bp = nt * tc
        if best is None or bp < best[0] or (bp == best[0] and tc > best[1]):
            best = (bp, tc)
    bp_chunks, tc = best
    return tc * ALIGN_PREF, bp_chunks * ALIGN_PREF


@functools.partial(jax.jit, static_argnames=("tb_max",))
def autoencoder_forward(x, w_all, *, tb_max=8192):
    """x: [B, 29] float32 -> [B, 29] float32 (== PyTorch AutoEncoder.forward).

    tb_max can be raised (e.g. 16384-32768 on v6e/v5e) for bigger single-core
    tiles; VMEM use is ~1.1 KiB per batch row + ~2.5 MiB of weights.
    """
    B = x.shape[0]
    TB, Bp = _choose_tiles(B, tb_max)
    # Only pads when B is unaligned; padded rows are zeros and are sliced off below.
    xp = jnp.pad(x, ((0, Bp - B), (0, 0))) if Bp != B else x

    flops = 2 * NUM_LAYERS * DPAD * DPAD * (Bp // G)
    bytes_accessed = Bp * (F_IN + F_OUT) * 4 + w_all.size * w_all.dtype.itemsize

    out = pl.pallas_call(
        autoencoder_kernel,
        out_shape=jax.ShapeDtypeStruct((Bp, F_OUT), jnp.float32),
        grid_spec=pltpu.PrefetchScalarGridSpec(
            num_scalar_prefetch=0,
            grid=(Bp // TB,),
            in_specs=[
                pl.BlockSpec((TB, F_IN), lambda i: (i, 0)),
                # Constant index_map: slab is fetched once, stays VMEM-resident.
                # (Could add pipeline_mode=pl.Buffered(1) to drop the unused
                #  second buffer copy; left at default for portability.)
                pl.BlockSpec((NUM_LAYERS, DPAD, DPAD), lambda i: (0, 0, 0)),
            ],
            out_specs=pl.BlockSpec((TB, F_OUT), lambda i: (i, 0)),
        ),
        compiler_params=pltpu.CompilerParams(
            dimension_semantics=("parallel",),
            vmem_limit_bytes=48 * 1024 * 1024,   # headroom for tb_max sweeps; <= v7x physical
        ),
        cost_estimate=pl.CostEstimate(
            flops=flops, transcendentals=0, bytes_accessed=bytes_accessed),
    )(xp, w_all)

    return out[:B] if Bp != B else out


def init_params(key):
    """Deterministic init mimicking nn.Linear's uniform(-1/sqrt(fan_in), +...)."""
    params = []
    for l in range(NUM_LAYERS):
        fan_in, fan_out = FEATS[l], FEATS[l + 1]
        key, kw, kb = jax.random.split(key, 3)
        bound = 1.0 / jnp.sqrt(fan_in)
        # PyTorch-native layout: W [out, in], b [out].
        w = jax.random.uniform(kw, (fan_out, fan_in), jnp.float32, -bound, bound)
        b = jax.random.uniform(kb, (fan_out,), jnp.float32, -bound, bound)
        params.append((w, b))
    return params


def reference_forward(x, params):
    h = x
    for (w, b) in params:
        h = jnp.maximum(h @ w.T + b, 0.0)
    return h


if __name__ == "__main__":
    key = jax.random.PRNGKey(0)
    key, kx = jax.random.split(key)
    B = 8
    x = jax.random.normal(kx, (B, F_IN), jnp.float32)

    params = init_params(key)
    w_all = pack_params(params)          # f32 default; pass jnp.bfloat16 for bf16 MXU dots

    out = autoencoder_forward(x, w_all)
    out = jax.block_until_ready(out)

    ref = reference_forward(x, params)
    assert out.shape == (B, F_OUT)
    assert jnp.allclose(out, ref, atol=1e-5, rtol=1e-5), "mismatch vs JAX reference"

    print("KERNEL_OK")
</pallas_src>

<mosaic_0001>
module attributes {stable_mosaic.version = 11 : i64} {
  func.func @autoencoder_kernel(%arg0: i32, %arg1: memref<64x29xf32, #tpu.memory_space<vmem>>, %arg2: memref<5x256x256xf32, #tpu.memory_space<vmem>>, %arg3: memref<64x29xf32, #tpu.memory_space<vmem>>) attributes {dimension_semantics = [#tpu.dimension_semantics<parallel>], iteration_bounds = array<i64: 1>, scalar_prefetch = 0 : i64, scratch_operands = 0 : i64, tpu.core_type = #tpu.core_type<tc>, window_params = [{transform_indices = @transform_0, window_bounds = array<i64: 64, 29>}, {pipeline_mode = #tpu.pipeline_mode<synchronous>, transform_indices = @transform_1, window_bounds = array<i64: 5, 256, 256>}, {transform_indices = @transform_2, window_bounds = array<i64: 64, 29>}]} {
    %c0 = arith.constant 0 : index
    %c0_0 = arith.constant 0 : index
    %0 = vector.load %arg1[%c0, %c0_0] : memref<64x29xf32, #tpu.memory_space<vmem>>, vector<64x29xf32>
    %cst = arith.constant 0.000000e+00 : f32
    %1 = vector.broadcast %cst : f32 to vector<8x2xf32>
    %cst_1 = arith.constant 1.000000e+00 : f32
    %2 = vector.broadcast %cst_1 : f32 to vector<8x1xf32>
    %3 = vector.extract_strided_slice %0 {offsets = [0, 0], sizes = [8, 29], strides = [1, 1]} : vector<64x29xf32> to vector<8x29xf32>
    %4 = tpu.concatenate %3, %1, %2 in 1 : vector<8x29xf32>, vector<8x2xf32>, vector<8x1xf32> -> vector<8x32xf32>
    %5 = tpu.transpose %4, [1, 0] : vector<8x32xf32> -> vector<32x8xf32>
    %6 = vector.extract_strided_slice %0 {offsets = [8, 0], sizes = [8, 29], strides = [1, 1]} : vector<64x29xf32> to vector<8x29xf32>
    %7 = tpu.concatenate %6, %1, %2 in 1 : vector<8x29xf32>, vector<8x2xf32>, vector<8x1xf32> -> vector<8x32xf32>
    %8 = tpu.transpose %7, [1, 0] : vector<8x32xf32> -> vector<32x8xf32>
    %9 = vector.extract_strided_slice %0 {offsets = [16, 0], sizes = [8, 29], strides = [1, 1]} : vector<64x29xf32> to vector<8x29xf32>
    %10 = tpu.concatenate %9, %1, %2 in 1 : vector<8x29xf32>, vector<8x2xf32>, vector<8x1xf32> -> vector<8x32xf32>
    %11 = tpu.transpose %10, [1, 0] : vector<8x32xf32> -> vector<32x8xf32>
    %12 = vector.extract_strided_slice %0 {offsets = [24, 0], sizes = [8, 29], strides = [1, 1]} : vector<64x29xf32> to vector<8x29xf32>
    %13 = tpu.concatenate %12, %1, %2 in 1 : vector<8x29xf32>, vector<8x2xf32>, vector<8x1xf32> -> vector<8x32xf32>
    %14 = tpu.transpose %13, [1, 0] : vector<8x32xf32> -> vector<32x8xf32>
    %15 = vector.extract_strided_slice %0 {offsets = [32, 0], sizes = [8, 29], strides = [1, 1]} : vector<64x29xf32> to vector<8x29xf32>
    %16 = tpu.concatenate %15, %1, %2 in 1 : vector<8x29xf32>, vector<8x2xf32>, vector<8x1xf32> -> vector<8x32xf32>
    %17 = tpu.transpose %16, [1, 0] : vector<8x32xf32> -> vector<32x8xf32>
    %18 = vector.extract_strided_slice %0 {offsets = [40, 0], sizes = [8, 29], strides = [1, 1]} : vector<64x29xf32> to vector<8x29xf32>
    %19 = tpu.concatenate %18, %1, %2 in 1 : vector<8x29xf32>, vector<8x2xf32>, vector<8x1xf32> -> vector<8x32xf32>
    %20 = tpu.transpose %19, [1, 0] : vector<8x32xf32> -> vector<32x8xf32>
    %21 = vector.extract_strided_slice %0 {offsets = [48, 0], sizes = [8, 29], strides = [1, 1]} : vector<64x29xf32> to vector<8x29xf32>
    %22 = tpu.concatenate %21, %1, %2 in 1 : vector<8x29xf32>, vector<8x2xf32>, vector<8x1xf32> -> vector<8x32xf32>
    %23 = tpu.transpose %22, [1, 0] : vector<8x32xf32> -> vector<32x8xf32>
    %24 = vector.extract_strided_slice %0 {offsets = [56, 0], sizes = [8, 29], strides = [1, 1]} : vector<64x29xf32> to vector<8x29xf32>
    %25 = tpu.concatenate %24, %1, %2 in 1 : vector<8x29xf32>, vector<8x2xf32>, vector<8x1xf32> -> vector<8x32xf32>
    %26 = tpu.transpose %25, [1, 0] : vector<8x32xf32> -> vector<32x8xf32>
    %27 = tpu.concatenate %5, %8, %11, %14, %17, %20, %23, %26 in 0 : vector<32x8xf32>, vector<32x8xf32>, vector<32x8xf32>, vector<32x8xf32>, vector<32x8xf32>, vector<32x8xf32>, vector<32x8xf32>, vector<32x8xf32> -> vector<256x8xf32>
    %c0_2 = arith.constant 0 : index
    %c0_3 = arith.constant 0 : index
    %c0_4 = arith.constant 0 : index
    %28 = vector.load %arg2[%c0_2, %c0_3, %c0_4] : memref<5x256x256xf32, #tpu.memory_space<vmem>>, vector<1x256x256xf32>
    %29 = vector.shape_cast %28 : vector<1x256x256xf32> to vector<256x256xf32>
    %cst_5 = arith.constant dense<0.000000e+00> : vector<256x8xf32>
    %30 = tpu.matmul %29, %27, %cst_5 {dimension_numbers = #tpu.dot_dimension_numbers<[1], [0], [0], [1], [0, 0, 1, 1], [], []>} : vector<256x256xf32>, vector<256x8xf32>, vector<256x8xf32> -> vector<256x8xf32>
    %cst_6 = arith.constant 0.000000e+00 : f32
    %31 = vector.broadcast %cst_6 : f32 to vector<256x8xf32>
    %32 = arith.maximumf %30, %31 : vector<256x8xf32>
    %c1 = arith.constant 1 : index
    %c0_7 = arith.constant 0 : index
    %c0_8 = arith.constant 0 : index
    %33 = vector.load %arg2[%c1, %c0_7, %c0_8] : memref<5x256x256xf32, #tpu.memory_space<vmem>>, vector<1x256x256xf32>
    %34 = vector.shape_cast %33 : vector<1x256x256xf32> to vector<256x256xf32>
    %cst_9 = arith.constant dense<0.000000e+00> : vector<256x8xf32>
    %35 = tpu.matmul %34, %32, %cst_9 {dimension_numbers = #tpu.dot_dimension_numbers<[1], [0], [0], [1], [0, 0, 1, 1], [], []>} : vector<256x256xf32>, vector<256x8xf32>, vector<256x8xf32> -> vector<256x8xf32>
    %cst_10 = arith.constant 0.000000e+00 : f32
    %36 = vector.broadcast %cst_10 : f32 to vector<256x8xf32>
    %37 = arith.maximumf %35, %36 : vector<256x8xf32>
    %c2 = arith.constant 2 : index
    %c0_11 = arith.constant 0 : index
    %c0_12 = arith.constant 0 : index
    %38 = vector.load %arg2[%c2, %c0_11, %c0_12] : memref<5x256x256xf32, #tpu.memory_space<vmem>>, vector<1x256x256xf32>
    %39 = vector.shape_cast %38 : vector<1x256x256xf32> to vector<256x256xf32>
    %cst_13 = arith.constant dense<0.000000e+00> : vector<256x8xf32>
    %40 = tpu.matmul %39, %37, %cst_13 {dimension_numbers = #tpu.dot_dimension_numbers<[1], [0], [0], [1], [0, 0, 1, 1], [], []>} : vector<256x256xf32>, vector<256x8xf32>, vector<256x8xf32> -> vector<256x8xf32>
    %cst_14 = arith.constant 0.000000e+00 : f32
    %41 = vector.broadcast %cst_14 : f32 to vector<256x8xf32>
    %42 = arith.maximumf %40, %41 : vector<256x8xf32>
    %c3 = arith.constant 3 : index
    %c0_15 = arith.constant 0 : index
    %c0_16 = arith.constant 0 : index
    %43 = vector.load %arg2[%c3, %c0_15, %c0_16] : memref<5x256x256xf32, #tpu.memory_space<vmem>>, vector<1x256x256xf32>
    %44 = vector.shape_cast %43 : vector<1x256x256xf32> to vector<256x256xf32>
    %cst_17 = arith.constant dense<0.000000e+00> : vector<256x8xf32>
    %45 = tpu.matmul %44, %42, %cst_17 {dimension_numbers = #tpu.dot_dimension_numbers<[1], [0], [0], [1], [0, 0, 1, 1], [], []>} : vector<256x256xf32>, vector<256x8xf32>, vector<256x8xf32> -> vector<256x8xf32>
    %cst_18 = arith.constant 0.000000e+00 : f32
    %46 = vector.broadcast %cst_18 : f32 to vector<256x8xf32>
    %47 = arith.maximumf %45, %46 : vector<256x8xf32>
    %c4 = arith.constant 4 : index
    %c0_19 = arith.constant 0 : index
    %c0_20 = arith.constant 0 : index
    %48 = vector.load %arg2[%c4, %c0_19, %c0_20] : memref<5x256x256xf32, #tpu.memory_space<vmem>>, vector<1x256x256xf32>
    %49 = vector.shape_cast %48 : vector<1x256x256xf32> to vector<256x256xf32>
    %cst_21 = arith.constant dense<0.000000e+00> : vector<256x8xf32>
    %50 = tpu.matmul %49, %47, %cst_21 {dimension_numbers = #tpu.dot_dimension_numbers<[1], [0], [0], [1], [0, 0, 1, 1], [], []>} : vector<256x256xf32>, vector<256x8xf32>, vector<256x8xf32> -> vector<256x8xf32>
    %cst_22 = arith.constant 0.000000e+00 : f32
    %51 = vector.broadcast %cst_22 : f32 to vector<256x8xf32>
    %52 = arith.maximumf %50, %51 : vector<256x8xf32>
    %53 = vector.extract_strided_slice %52 {offsets = [0, 0], sizes = [32, 8], strides = [1, 1]} : vector<256x8xf32> to vector<32x8xf32>
    %54 = tpu.transpose %53, [1, 0] : vector<32x8xf32> -> vector<8x32xf32>
    %55 = vector.extract_strided_slice %52 {offsets = [32, 0], sizes = [32, 8], strides = [1, 1]} : vector<256x8xf32> to vector<32x8xf32>
    %56 = tpu.transpose %55, [1, 0] : vector<32x8xf32> -> vector<8x32xf32>
    %57 = vector.extract_strided_slice %52 {offsets = [64, 0], sizes = [32, 8], strides = [1, 1]} : vector<256x8xf32> to vector<32x8xf32>
    %58 = tpu.transpose %57, [1, 0] : vector<32x8xf32> -> vector<8x32xf32>
    %59 = vector.extract_strided_slice %52 {offsets = [96, 0], sizes = [32, 8], strides = [1, 1]} : vector<256x8xf32> to vector<32x8xf32>
    %60 = tpu.transpose %59, [1, 0] : vector<32x8xf32> -> vector<8x32xf32>
    %61 = vector.extract_strided_slice %52 {offsets = [128, 0], sizes = [32, 8], strides = [1, 1]} : vector<256x8xf32> to vector<32x8xf32>
    %62 = tpu.transpose %61, [1, 0] : vector<32x8xf32> -> vector<8x32xf32>
    %63 = vector.extract_strided_slice %52 {offsets = [160, 0], sizes = [32, 8], strides = [1, 1]} : vector<256x8xf32> to vector<32x8xf32>
    %64 = tpu.transpose %63, [1, 0] : vector<32x8xf32> -> vector<8x32xf32>
    %65 = vector.extract_strided_slice %52 {offsets = [192, 0], sizes = [32, 8], strides = [1, 1]} : vector<256x8xf32> to vector<32x8xf32>
    %66 = tpu.transpose %65, [1, 0] : vector<32x8xf32> -> vector<8x32xf32>
    %67 = vector.extract_strided_slice %52 {offsets = [224, 0], sizes = [32, 8], strides = [1, 1]} : vector<256x8xf32> to vector<32x8xf32>
    %68 = tpu.transpose %67, [1, 0] : vector<32x8xf32> -> vector<8x32xf32>
    %69 = tpu.concatenate %54, %56, %58, %60, %62, %64, %66, %68 in 0 : vector<8x32xf32>, vector<8x32xf32>, vector<8x32xf32>, vector<8x32xf32>, vector<8x32xf32>, vector<8x32xf32>, vector<8x32xf32>, vector<8x32xf32> -> vector<64x32xf32>
    %70 = vector.extract_strided_slice %69 {offsets = [0, 0], sizes = [64, 29], strides = [1, 1]} : vector<64x32xf32> to vector<64x29xf32>
    %c0_23 = arith.constant 0 : index
    %c0_24 = arith.constant 0 : index
    %71 = vector.load %arg3[%c0_23, %c0_24] : memref<64x29xf32, #tpu.memory_space<vmem>>, vector<64x29xf32>
    tpu.vector_store %arg3[%c0_23, %c0_24], %70 {strides = array<i32>} : memref<64x29xf32, #tpu.memory_space<vmem>>, vector<64x29xf32>,
    return
  }
  func.func @transform_0(%arg0: i32) -> (i32, i32) {
    %c0_i32 = arith.constant 0 : i32
    %c0_i32_0 = arith.constant 0 : i32
    return %arg0, %c0_i32 : i32, i32
  }
  func.func @transform_1(%arg0: i32) -> (i32, i32, i32) {
    %c0_i32 = arith.constant 0 : i32
    %c0_i32_0 = arith.constant 0 : i32
    %c0_i32_1 = arith.constant 0 : i32
    %c0_i32_2 = arith.constant 0 : i32
    return %c0_i32, %c0_i32_0, %c0_i32_1 : i32, i32, i32
  }
  func.func @transform_2(%arg0: i32) -> (i32, i32) {
    %c0_i32 = arith.constant 0 : i32
    %c0_i32_0 = arith.constant 0 : i32
    return %arg0, %c0_i32 : i32, i32
  }
}

</mosaic_0001>

<llo_original>
// kernel: autoencoder_forward.1
$region0: #{autoencoder_forward.1}
  #allocation0 [shape = 'u32[]', space=smem, size = 0x4, offset = 0x4, fixed_abs, tag = 'smem constant byte address 0x4 - core index']
  #allocation1 [shape = 'u32[144,128]{1,0:T(1,128)}', space=vmem, size = 0x12000, scoped, tag = 'internal scratch']
  %s0 = inlined_call_operand.vmem [shape: f32[64,29], index: 0, kind: input, shape index: {}]
  %s1 = inlined_call_operand.hbm [shape: f32[5,256,256], index: 1, kind: input, shape index: {}]
  %s2 = inlined_call_operand.vmem [shape: f32[64,29], index: 2, kind: output, shape index: {}]
  %s3 = sld [smem:[#allocation0]]
  $region22: #{autoencoder_forward.1} parent=0
    _
  %s5 = ssub.s32 1, %s3
  %s6 = scalar_select 0, %s5, %s3
  $region1: #{autoencoder_forward.1} parent=0
    #allocation2 [shape = 'u8[1310720]{0}', space=vmem, size = 0x140000, scoped, tag = 'input window, operand 1, single buffered']
    #allocation3 [shape = 's32[1]{0}', space=sflag, size = 0x4, scoped, tag = 'scoped memory for autoencoder_forward.1']
    %7 = vsyncpa [#allocation3], 0
    // Predicated region
    $region2: #{autoencoder_forward.1} parent=1 // pred_check
      _
    $region3: #{autoencoder_forward.1} parent=1 // pred_check_branch
      %9 = sbr.rel (0) target = $region5
    $region4: #{autoencoder_forward.1} parent=1 // pred_region
      _
    $region5: #{autoencoder_forward.1} parent=1 // pred_fallthru
      _
    // Predicated region
    $region6: #{autoencoder_forward.1} parent=1 // pred_check
      _
    $region7: #{autoencoder_forward.1} parent=1 // pred_check_branch
      %11 = sbr.rel (0) target = $region9
    $region8: #{autoencoder_forward.1} parent=1 // pred_region
      %s13 = ssub.s32 40960, 40960
      %14 = vsyncadd [#allocation3], %s13
      %s15 = sshll.u32 [#allocation2], 4
      %s16 = int_to_ptr.vmem [resolvable:$true] %s15
      %21 = dma.hbm_to_vmem [thread:$0]  %s1, 40960, %s16, [#allocation3], 256, 256, 16
    $region9: #{autoencoder_forward.1} parent=1 // pred_fallthru
      _
    // Predicated region
    $region10: #{autoencoder_forward.1} parent=1 // pred_check
      _
    $region11: #{autoencoder_forward.1} parent=1 // pred_check_branch
      %23 = sbr.rel (0) target = $region13
    $region12: #{autoencoder_forward.1} parent=1 // pred_region
      %24 = dma.done [#allocation3], 40960
    $region13: #{autoencoder_forward.1} parent=1 // pred_fallthru
      _
    %v25 = vld [vmem:[%s0] sm:$0xff]
    %v26 = vld [vmem:[%s0 + $0x8] sm:$0xff]
    %v27 = vld [vmem:[%s0 + $0x10] sm:$0xff]
    %v28 = vld [vmem:[%s0 + $0x18] sm:$0xff]
    %v29 = vld [vmem:[%s0 + $0x20] sm:$0xff]
    %v30 = vld [vmem:[%s0 + $0x28] sm:$0xff]
    %v31 = vld [vmem:[%s0 + $0x30] sm:$0xff]
    %v32 = vld [vmem:[%s0 + $0x38] sm:$0xff]
    %vm33 = vcmask 236544
    %v34 = vsel %vm33, %v25, 0.0
    %vm35 = vcmask 252928
    %v36 = vsel %vm35, %v34, 1.0
    %37 = vxpose.xlu0.b32.start [1/16] %v36, 128
    %38 = vxpose.xlu0.b32.cont [2/16] 0.0, 128
    %39 = vxpose.xlu0.b32.cont [3/16] 0.0, 128
    %40 = vxpose.xlu0.b32.cont [4/16] 0.0, 128
    %41 = vxpose.xlu0.b32.cont [5/16] 0.0, 128
    %42 = vxpose.xlu0.b32.cont [6/16] 0.0, 128
    %43 = vxpose.xlu0.b32.cont [7/16] 0.0, 128
    %44 = vxpose.xlu0.b32.cont [8/16] 0.0, 128
    %45 = vxpose.xlu0.b32.cont [9/16] 0.0, 128
    %46 = vxpose.xlu0.b32.cont [10/16] 0.0, 128
    %47 = vxpose.xlu0.b32.cont [11/16] 0.0, 128
    %48 = vxpose.xlu0.b32.cont [12/16] 0.0, 128
    %49 = vxpose.xlu0.b32.cont [13/16] 0.0, 128
    %50 = vxpose.xlu0.b32.cont [14/16] 0.0, 128
    %51 = vxpose.xlu0.b32.cont [15/16] 0.0, 128
    %52 = vxpose.xlu0.b32.end [16/16] 0.0, 128
    %v53 = vpop.trf.xlu0
    %v54 = vpop.trf.xlu0
    %v55 = vpop.trf.xlu0
    %v56 = vpop.trf.xlu0
    %v57 = vpop.trf.xlu0
    %v58 = vpop.trf.xlu0
    %v59 = vpop.trf.xlu0
    %v60 = vpop.trf.xlu0
    %v61 = vpop.trf.xlu0
    %v62 = vpop.trf.xlu0
    %v63 = vpop.trf.xlu0
    %v64 = vpop.trf.xlu0
    %v65 = vpop.trf.xlu0
    %v66 = vpop.trf.xlu0
    %v67 = vpop.trf.xlu0
    %v68 = vpop.trf.xlu0
    %v69 = vsel %vm33, %v26, 0.0
    %v70 = vsel %vm35, %v69, 1.0
    %71 = vxpose.xlu0.b32.start [1/16] %v70, 128
    %72 = vxpose.xlu0.b32.cont [2/16] 0.0, 128
    %73 = vxpose.xlu0.b32.cont [3/16] 0.0, 128
    %74 = vxpose.xlu0.b32.cont [4/16] 0.0, 128
    %75 = vxpose.xlu0.b32.cont [5/16] 0.0, 128
    %76 = vxpose.xlu0.b32.cont [6/16] 0.0, 128
    %77 = vxpose.xlu0.b32.cont [7/16] 0.0, 128
    %78 = vxpose.xlu0.b32.cont [8/16] 0.0, 128
    %79 = vxpose.xlu0.b32.cont [9/16] 0.0, 128
    %80 = vxpose.xlu0.b32.cont [10/16] 0.0, 128
    %81 = vxpose.xlu0.b32.cont [11/16] 0.0, 128
    %82 = vxpose.xlu0.b32.cont [12/16] 0.0, 128
    %83 = vxpose.xlu0.b32.cont [13/16] 0.0, 128
    %84 = vxpose.xlu0.b32.cont [14/16] 0.0, 128
    %85 = vxpose.xlu0.b32.cont [15/16] 0.0, 128
    %86 = vxpose.xlu0.b32.end [16/16] 0.0, 128
    %v87 = vpop.trf.xlu0
    %v88 = vpop.trf.xlu0
    %v89 = vpop.trf.xlu0
    %v90 = vpop.trf.xlu0
    %v91 = vpop.trf.xlu0
    %v92 = vpop.trf.xlu0
    %v93 = vpop.trf.xlu0
    %v94 = vpop.trf.xlu0
    %v95 = vpop.trf.xlu0
    %v96 = vpop.trf.xlu0
    %v97 = vpop.trf.xlu0
    %v98 = vpop.trf.xlu0
    %v99 = vpop.trf.xlu0
    %v100 = vpop.trf.xlu0
    %v101 = vpop.trf.xlu0
    %v102 = vpop.trf.xlu0
    %v103 = vsel %vm33, %v27, 0.0
    %v104 = vsel %vm35, %v103, 1.0
    %105 = vxpose.xlu0.b32.start [1/16] %v104, 128
    %106 = vxpose.xlu0.b32.cont [2/16] 0.0, 128
    %107 = vxpose.xlu0.b32.cont [3/16] 0.0, 128
    %108 = vxpose.xlu0.b32.cont [4/16] 0.0, 128
    %109 = vxpose.xlu0.b32.cont [5/16] 0.0, 128
    %110 = vxpose.xlu0.b32.cont [6/16] 0.0, 128
    %111 = vxpose.xlu0.b32.cont [7/16] 0.0, 128
    %112 = vxpose.xlu0.b32.cont [8/16] 0.0, 128
    %113 = vxpose.xlu0.b32.cont [9/16] 0.0, 128
    %114 = vxpose.xlu0.b32.cont [10/16] 0.0, 128
    %115 = vxpose.xlu0.b32.cont [11/16] 0.0, 128
    %116 = vxpose.xlu0.b32.cont [12/16] 0.0, 128
    %117 = vxpose.xlu0.b32.cont [13/16] 0.0, 128
    %118 = vxpose.xlu0.b32.cont [14/16] 0.0, 128
    %119 = vxpose.xlu0.b32.cont [15/16] 0.0, 128
    %120 = vxpose.xlu0.b32.end [16/16] 0.0, 128
    %v121 = vpop.trf.xlu0
    %v122 = vpop.trf.xlu0
    %v123 = vpop.trf.xlu0
    %v124 = vpop.trf.xlu0
    %v125 = vpop.trf.xlu0
    %v126 = vpop.trf.xlu0
    %v127 = vpop.trf.xlu0
    %v128 = vpop.trf.xlu0
    %v129 = vpop.trf.xlu0
    %v130 = vpop.trf.xlu0
    %v131 = vpop.trf.xlu0
    %v132 = vpop.trf.xlu0
    %v133 = vpop.trf.xlu0
    %v134 = vpop.trf.xlu0
    %v135 = vpop.trf.xlu0
    %v136 = vpop.trf.xlu0
    %v137 = vsel %vm33, %v28, 0.0
    %v138 = vsel %vm35, %v137, 1.0
    %139 = vxpose.xlu0.b32.start [1/16] %v138, 128
    %140 = vxpose.xlu0.b32.cont [2/16] 0.0, 128
    %141 = vxpose.xlu0.b32.cont [3/16] 0.0, 128
    %142 = vxpose.xlu0.b32.cont [4/16] 0.0, 128
    %143 = vxpose.xlu0.b32.cont [5/16] 0.0, 128
    %144 = vxpose.xlu0.b32.cont [6/16] 0.0, 128
    %145 = vxpose.xlu0.b32.cont [7/16] 0.0, 128
    %146 = vxpose.xlu0.b32.cont [8/16] 0.0, 128
    %147 = vxpose.xlu0.b32.cont [9/16] 0.0, 128
    %148 = vxpose.xlu0.b32.cont [10/16] 0.0, 128
    %149 = vxpose.xlu0.b32.cont [11/16] 0.0, 128
    %150 = vxpose.xlu0.b32.cont [12/16] 0.0, 128
    %151 = vxpose.xlu0.b32.cont [13/16] 0.0, 128
    %152 = vxpose.xlu0.b32.cont [14/16] 0.0, 128
    %153 = vxpose.xlu0.b32.cont [15/16] 0.0, 128
    %154 = vxpose.xlu0.b32.end [16/16] 0.0, 128
    %v155 = vpop.trf.xlu0
    %v156 = vpop.trf.xlu0
    %v157 = vpop.trf.xlu0
    %v158 = vpop.trf.xlu0
    %v159 = vpop.trf.xlu0
    %v160 = vpop.trf.xlu0
    %v161 = vpop.trf.xlu0
    %v162 = vpop.trf.xlu0
    %v163 = vpop.trf.xlu0
    %v164 = vpop.trf.xlu0
    %v165 = vpop.trf.xlu0
    %v166 = vpop.trf.xlu0
    %v167 = vpop.trf.xlu0
    %v168 = vpop.trf.xlu0
    %v169 = vpop.trf.xlu0
    %v170 = vpop.trf.xlu0
    %v171 = vsel %vm33, %v29, 0.0
    %v172 = vsel %vm35, %v171, 1.0
    %173 = vxpose.xlu0.b32.start [1/16] %v172, 128
    %174 = vxpose.xlu0.b32.cont [2/16] 0.0, 128
    %175 = vxpose.xlu0.b32.cont [3/16] 0.0, 128
    %176 = vxpose.xlu0.b32.cont [4/16] 0.0, 128
    %177 = vxpose.xlu0.b32.cont [5/16] 0.0, 128
    %178 = vxpose.xlu0.b32.cont [6/16] 0.0, 128
    %179 = vxpose.xlu0.b32.cont [7/16] 0.0, 128
    %180 = vxpose.xlu0.b32.cont [8/16] 0.0, 128
    %181 = vxpose.xlu0.b32.cont [9/16] 0.0, 128
    %182 = vxpose.xlu0.b32.cont [10/16] 0.0, 128
    %183 = vxpose.xlu0.b32.cont [11/16] 0.0, 128
    %184 = vxpose.xlu0.b32.cont [12/16] 0.0, 128
    %185 = vxpose.xlu0.b32.cont [13/16] 0.0, 128
    %186 = vxpose.xlu0.b32.cont [14/16] 0.0, 128
    %187 = vxpose.xlu0.b32.cont [15/16] 0.0, 128
    %188 = vxpose.xlu0.b32.end [16/16] 0.0, 128
    %v189 = vpop.trf.xlu0
    %v190 = vpop.trf.xlu0
    %v191 = vpop.trf.xlu0
    %v192 = vpop.trf.xlu0
    %v193 = vpop.trf.xlu0
    %v194 = vpop.trf.xlu0
    %v195 = vpop.trf.xlu0
    %v196 = vpop.trf.xlu0
    %v197 = vpop.trf.xlu0
    %v198 = vpop.trf.xlu0
    %v199 = vpop.trf.xlu0
    %v200 = vpop.trf.xlu0
    %v201 = vpop.trf.xlu0
    %v202 = vpop.trf.xlu0
    %v203 = vpop.trf.xlu0
    %v204 = vpop.trf.xlu0
    %v205 = vsel %vm33, %v30, 0.0
    %v206 = vsel %vm35, %v205, 1.0
    %207 = vxpose.xlu0.b32.start [1/16] %v206, 128
    %208 = vxpose.xlu0.b32.cont [2/16] 0.0, 128
    %209 = vxpose.xlu0.b32.cont [3/16] 0.0, 128
    %210 = vxpose.xlu0.b32.cont [4/16] 0.0, 128
    %211 = vxpose.xlu0.b32.cont [5/16] 0.0, 128
    %212 = vxpose.xlu0.b32.cont [6/16] 0.0, 128
    %213 = vxpose.xlu0.b32.cont [7/16] 0.0, 128
    %214 = vxpose.xlu0.b32.cont [8/16] 0.0, 128
    %215 = vxpose.xlu0.b32.cont [9/16] 0.0, 128
    %216 = vxpose.xlu0.b32.cont [10/16] 0.0, 128
    %217 = vxpose.xlu0.b32.cont [11/16] 0.0, 128
    %218 = vxpose.xlu0.b32.cont [12/16] 0.0, 128
    %219 = vxpose.xlu0.b32.cont [13/16] 0.0, 128
    %220 = vxpose.xlu0.b32.cont [14/16] 0.0, 128
    %221 = vxpose.xlu0.b32.cont [15/16] 0.0, 128
    %222 = vxpose.xlu0.b32.end [16/16] 0.0, 128
    %v223 = vpop.trf.xlu0
    %v224 = vpop.trf.xlu0
    %v225 = vpop.trf.xlu0
    %v226 = vpop.trf.xlu0
    %v227 = vpop.trf.xlu0
    %v228 = vpop.trf.xlu0
    %v229 = vpop.trf.xlu0
    %v230 = vpop.trf.xlu0
    %v231 = vpop.trf.xlu0
    %v232 = vpop.trf.xlu0
    %v233 = vpop.trf.xlu0
    %v234 = vpop.trf.xlu0
    %v235 = vpop.trf.xlu0
    %v236 = vpop.trf.xlu0
    %v237 = vpop.trf.xlu0
    %v238 = vpop.trf.xlu0
    %v239 = vsel %vm33, %v31, 0.0
    %v240 = vsel %vm35, %v239, 1.0
    %241 = vxpose.xlu0.b32.start [1/16] %v240, 128
    %242 = vxpose.xlu0.b32.cont [2/16] 0.0, 128
    %243 = vxpose.xlu0.b32.cont [3/16] 0.0, 128
    %244 = vxpose.xlu0.b32.cont [4/16] 0.0, 128
    %245 = vxpose.xlu0.b32.cont [5/16] 0.0, 128
    %246 = vxpose.xlu0.b32.cont [6/16] 0.0, 128
    %247 = vxpose.xlu0.b32.cont [7/16] 0.0, 128
    %248 = vxpose.xlu0.b32.cont [8/16] 0.0, 128
    %249 = vxpose.xlu0.b32.cont [9/16] 0.0, 128
    %250 = vxpose.xlu0.b32.cont [10/16] 0.0, 128
    %251 = vxpose.xlu0.b32.cont [11/16] 0.0, 128
    %252 = vxpose.xlu0.b32.cont [12/16] 0.0, 128
    %253 = vxpose.xlu0.b32.cont [13/16] 0.0, 128
    %254 = vxpose.xlu0.b32.cont [14/16] 0.0, 128
    %255 = vxpose.xlu0.b32.cont [15/16] 0.0, 128
    %256 = vxpose.xlu0.b32.end [16/16] 0.0, 128
    %v257 = vpop.trf.xlu0
    %v258 = vpop.trf.xlu0
    %v259 = vpop.trf.xlu0
    %v260 = vpop.trf.xlu0
    %v261 = vpop.trf.xlu0
    %v262 = vpop.trf.xlu0
    %v263 = vpop.trf.xlu0
    %v264 = vpop.trf.xlu0
    %v265 = vpop.trf.xlu0
    %v266 = vpop.trf.xlu0
    %v267 = vpop.trf.xlu0
    %v268 = vpop.trf.xlu0
    %v269 = vpop.trf.xlu0
    %v270 = vpop.trf.xlu0
    %v271 = vpop.trf.xlu0
    %v272 = vpop.trf.xlu0
    %v273 = vsel %vm33, %v32, 0.0
    %v274 = vsel %vm35, %v273, 1.0
    %275 = vxpose.xlu0.b32.start [1/16] %v274, 128
    %276 = vxpose.xlu0.b32.cont [2/16] 0.0, 128
    %277 = vxpose.xlu0.b32.cont [3/16] 0.0, 128
    %278 = vxpose.xlu0.b32.cont [4/16] 0.0, 128
    %279 = vxpose.xlu0.b32.cont [5/16] 0.0, 128
    %280 = vxpose.xlu0.b32.cont [6/16] 0.0, 128
    %281 = vxpose.xlu0.b32.cont [7/16] 0.0, 128
    %282 = vxpose.xlu0.b32.cont [8/16] 0.0, 128
    %283 = vxpose.xlu0.b32.cont [9/16] 0.0, 128
    %284 = vxpose.xlu0.b32.cont [10/16] 0.0, 128
    %285 = vxpose.xlu0.b32.cont [11/16] 0.0, 128
    %286 = vxpose.xlu0.b32.cont [12/16] 0.0, 128
    %287 = vxpose.xlu0.b32.cont [13/16] 0.0, 128
    %288 = vxpose.xlu0.b32.cont [14/16] 0.0, 128
    %289 = vxpose.xlu0.b32.cont [15/16] 0.0, 128
    %290 = vxpose.xlu0.b32.end [16/16] 0.0, 128
    %v291 = vpop.trf.xlu0
    %v292 = vpop.trf.xlu0
    %v293 = vpop.trf.xlu0
    %v294 = vpop.trf.xlu0
    %v295 = vpop.trf.xlu0
    %v296 = vpop.trf.xlu0
    %v297 = vpop.trf.xlu0
    %v298 = vpop.trf.xlu0
    %v299 = vpop.trf.xlu0
    %v300 = vpop.trf.xlu0
    %v301 = vpop.trf.xlu0
    %v302 = vpop.trf.xlu0
    %v303 = vpop.trf.xlu0
    %v304 = vpop.trf.xlu0
    %v305 = vpop.trf.xlu0
    %v306 = vpop.trf.xlu0
    %v307 = vld [vmem:[#allocation2] sm:$0xff]
    %v308 = vld [vmem:[#allocation2 + $0x8] sm:$0xff]
    %v309 = vld [vmem:[#allocation2 + $0x10] sm:$0xff]
    %v310 = vld [vmem:[#allocation2 + $0x18] sm:$0xff]
    %v311 = vld [vmem:[#allocation2 + $0x20] sm:$0xff]
    %v312 = vld [vmem:[#allocation2 + $0x28] sm:$0xff]
    %v313 = vld [vmem:[#allocation2 + $0x30] sm:$0xff]
    %v314 = vld [vmem:[#allocation2 + $0x38] sm:$0xff]
    %v315 = vld [vmem:[#allocation2 + $0x40] sm:$0xff]
    %v316 = vld [vmem:[#allocation2 + $0x48] sm:$0xff]
    %v317 = vld [vmem:[#allocation2 + $0x50] sm:$0xff]
    %v318 = vld [vmem:[#allocation2 + $0x58] sm:$0xff]
    %v319 = vld [vmem:[#allocation2 + $0x60] sm:$0xff]
    %v320 = vld [vmem:[#allocation2 + $0x68] sm:$0xff]
    %v321 = vld [vmem:[#allocation2 + $0x70] sm:$0xff]
    %v322 = vld [vmem:[#allocation2 + $0x78] sm:$0xff]
    %v323 = vld [vmem:[#allocation2 + $0x80] sm:$0xff]
    %v324 = vld [vmem:[#allocation2 + $0x88] sm:$0xff]
    %v325 = vld [vmem:[#allocation2 + $0x90] sm:$0xff]
    %v326 = vld [vmem:[#allocation2 + $0x98] sm:$0xff]
    %v327 = vld [vmem:[#allocation2 + $0xa0] sm:$0xff]
    %v328 = vld [vmem:[#allocation2 + $0xa8] sm:$0xff]
    %v329 = vld [vmem:[#allocation2 + $0xb0] sm:$0xff]
    %v330 = vld [vmem:[#allocation2 + $0xb8] sm:$0xff]
    %v331 = vld [vmem:[#allocation2 + $0xc0] sm:$0xff]
    %v332 = vld [vmem:[#allocation2 + $0xc8] sm:$0xff]
    %v333 = vld [vmem:[#allocation2 + $0xd0] sm:$0xff]
    %v334 = vld [vmem:[#allocation2 + $0xd8] sm:$0xff]
    %v335 = vld [vmem:[#allocation2 + $0xe0] sm:$0xff]
    %v336 = vld [vmem:[#allocation2 + $0xe8] sm:$0xff]
    %v337 = vld [vmem:[#allocation2 + $0xf0] sm:$0xff]
    %v338 = vld [vmem:[#allocation2 + $0xf8] sm:$0xff]
    %v339 = vld [vmem:[#allocation2 + $0x100] sm:$0xff]
    %v340 = vld [vmem:[#allocation2 + $0x108] sm:$0xff]
    %v341 = vld [vmem:[#allocation2 + $0x110] sm:$0xff]
    %v342 = vld [vmem:[#allocation2 + $0x118] sm:$0xff]
    %v343 = vld [vmem:[#allocation2 + $0x120] sm:$0xff]
    %v344 = vld [vmem:[#allocation2 + $0x128] sm:$0xff]
    %v345 = vld [vmem:[#allocation2 + $0x130] sm:$0xff]
    %v346 = vld [vmem:[#allocation2 + $0x138] sm:$0xff]
    %v347 = vld [vmem:[#allocation2 + $0x140] sm:$0xff]
    %v348 = vld [vmem:[#allocation2 + $0x148] sm:$0xff]
    %v349 = vld [vmem:[#allocation2 + $0x150] sm:$0xff]
    %v350 = vld [vmem:[#allocation2 + $0x158] sm:$0xff]
    %v351 = vld [vmem:[#allocation2 + $0x160] sm:$0xff]
    %v352 = vld [vmem:[#allocation2 + $0x168] sm:$0xff]
    %v353 = vld [vmem:[#allocation2 + $0x170] sm:$0xff]
    %v354 = vld [vmem:[#allocation2 + $0x178] sm:$0xff]
    %v355 = vld [vmem:[#allocation2 + $0x180] sm:$0xff]
    %v356 = vld [vmem:[#allocation2 + $0x188] sm:$0xff]
    %v357 = vld [vmem:[#allocation2 + $0x190] sm:$0xff]
    %v358 = vld [vmem:[#allocation2 + $0x198] sm:$0xff]
    %v359 = vld [vmem:[#allocation2 + $0x1a0] sm:$0xff]
    %v360 = vld [vmem:[#allocation2 + $0x1a8] sm:$0xff]
    %v361 = vld [vmem:[#allocation2 + $0x1b0] sm:$0xff]
    %v362 = vld [vmem:[#allocation2 + $0x1b8] sm:$0xff]
    %v363 = vld [vmem:[#allocation2 + $0x1c0] sm:$0xff]
    %v364 = vld [vmem:[#allocation2 + $0x1c8] sm:$0xff]
    %v365 = vld [vmem:[#allocation2 + $0x1d0] sm:$0xff]
    %v366 = vld [vmem:[#allocation2 + $0x1d8] sm:$0xff]
    %v367 = vld [vmem:[#allocation2 + $0x1e0] sm:$0xff]
    %v368 = vld [vmem:[#allocation2 + $0x1e8] sm:$0xff]
    %v369 = vld [vmem:[#allocation2 + $0x1f0] sm:$0xff]
    %v370 = vld [vmem:[#allocation2 + $0x1f8] sm:$0xff]
    %371 = vmatprep.subr.mxu0 0.0
    %372 = vmatpush1.msra.mxu0 %v53
    %373 = vmatprep.subr.mxu0 0.0
    %374 = vmatpush1.msra.mxu0 %v54
    %375 = vmatprep.subr.mxu0 0.0
    %376 = vmatpush1.msra.mxu0 %v55
    %377 = vmatprep.subr.mxu0 0.0
    %378 = vmatpush1.msra.mxu0 %v56
    %379 = vmatprep.subr.mxu0 0.0
    %380 = vmatpush1.msra.mxu0 %v87
    %381 = vmatprep.subr.mxu0 0.0
    %382 = vmatpush1.msra.mxu0 %v88
    %383 = vmatprep.subr.mxu0 0.0
    %384 = vmatpush1.msra.mxu0 %v89
    %385 = vmatprep.subr.mxu0 0.0
    %386 = vmatpush1.msra.mxu0 %v90
    %387 = vmatprep.subr.mxu0 0.0
    %388 = vmatpush1.msra.mxu0 %v121
    %389 = vmatprep.subr.mxu0 0.0
    %390 = vmatpush1.msra.mxu0 %v122
    %391 = vmatprep.subr.mxu0 0.0
    %392 = vmatpush1.msra.mxu0 %v123
    %393 = vmatprep.subr.mxu0 0.0
    %394 = vmatpush1.msra.mxu0 %v124
    %395 = vmatprep.subr.mxu0 0.0
    %396 = vmatpush1.msra.mxu0 %v155
    %397 = vmatprep.subr.mxu0 0.0
    %398 = vmatpush1.msra.mxu0 %v156
    %399 = vmatprep.subr.mxu0 0.0
    %400 = vmatpush1.msra.mxu0 %v157
    %401 = vmatprep.subr.mxu0 0.0
    %402 = vmatpush1.msra.mxu0 %v158
    %403 = vmatprep.subr.mxu0 0.0
    %404 = vmatpush1.msra.mxu0 %v189
    %405 = vmatprep.subr.mxu0 0.0
    %406 = vmatpush1.msra.mxu0 %v190
    %407 = vmatprep.subr.mxu0 0.0
    %408 = vmatpush1.msra.mxu0 %v191
    %409 = vmatprep.subr.mxu0 0.0
    %410 = vmatpush1.msra.mxu0 %v192
    %411 = vmatprep.subr.mxu0 0.0
    %412 = vmatpush1.msra.mxu0 %v223
    %413 = vmatprep.subr.mxu0 0.0
    %414 = vmatpush1.msra.mxu0 %v224
    %415 = vmatprep.subr.mxu0 0.0
    %416 = vmatpush1.msra.mxu0 %v225
    %417 = vmatprep.subr.mxu0 0.0
    %418 = vmatpush1.msra.mxu0 %v226
    %419 = vmatprep.subr.mxu0 0.0
    %420 = vmatpush1.msra.mxu0 %v257
    %421 = vmatprep.subr.mxu0 0.0
    %422 = vmatpush1.msra.mxu0 %v258
    %423 = vmatprep.subr.mxu0 0.0
    %424 = vmatpush1.msra.mxu0 %v259
    %425 = vmatprep.subr.mxu0 0.0
    %426 = vmatpush1.msra.mxu0 %v260
    %427 = vmatprep.subr.mxu0 0.0
    %428 = vmatpush1.msra.mxu0 %v291
    %429 = vmatprep.subr.mxu0 0.0
    %430 = vmatpush1.msra.mxu0 %v292
    %431 = vmatprep.subr.mxu0 0.0
    %432 = vmatpush1.msra.mxu0 %v293
    %433 = vmatprep.subr.mxu0 0.0
    %434 = vmatpush1.msra.mxu0 %v294
    %435 = vmatprep.mubr.f32.mxu0 %v308
    %436 = vmatmul.mubr.f32.gmra.mrb[0].mxu0 %v307
    %v437 = vpop.f32.mrb[0].mxu0
    %v438 = vadd.f32 0.0, %v437
    %v439 = vpop.f32.mrb[0].mxu0
    %440 = vmatprep.mubr.f32.mxu0 %v310
    %441 = vmatmul.mubr.f32.gmra.mrb[0].mxu0 %v309
    %v442 = vpop.f32.mrb[0].mxu0
    %v443 = vadd.f32 0.0, %v442
    %v444 = vpop.f32.mrb[0].mxu0
    %445 = vmatprep.mubr.f32.mxu0 %v312
    %446 = vmatmul.mubr.f32.gmra.mrb[0].mxu0 %v311
    %v447 = vpop.f32.mrb[0].mxu0
    %v448 = vadd.f32 0.0, %v447
    %v449 = vpop.f32.mrb[0].mxu0
    %450 = vmatprep.mubr.f32.mxu0 %v314
    %451 = vmatmul.mubr.f32.gmra.mrb[0].mxu0 %v313
    %v452 = vpop.f32.mrb[0].mxu0
    %v453 = vadd.f32 0.0, %v452
    %v454 = vpop.f32.mrb[0].mxu0
    %455 = vmatprep.mubr.f32.mxu0 %v316
    %456 = vmatmul.mubr.f32.gmra.mrb[0].mxu0 %v315
    %v457 = vpop.f32.mrb[0].mxu0
    %v458 = vadd.f32 0.0, %v457
    %v459 = vpop.f32.mrb[0].mxu0
    %460 = vmatprep.mubr.f32.mxu0 %v318
    %461 = vmatmul.mubr.f32.gmra.mrb[0].mxu0 %v317
    %v462 = vpop.f32.mrb[0].mxu0
    %v463 = vadd.f32 0.0, %v462
    %v464 = vpop.f32.mrb[0].mxu0
    %465 = vmatprep.mubr.f32.mxu0 %v320
    %466 = vmatmul.mubr.f32.gmra.mrb[0].mxu0 %v319
    %v467 = vpop.f32.mrb[0].mxu0
    %v468 = vadd.f32 0.0, %v467
    %v469 = vpop.f32.mrb[0].mxu0
    %470 = vmatprep.mubr.f32.mxu0 %v322
    %471 = vmatmul.mubr.f32.gmra.mrb[0].mxu0 %v321
    %v472 = vpop.f32.mrb[0].mxu0
    %v473 = vadd.f32 0.0, %v472
    %v474 = vpop.f32.mrb[0].mxu0
    %475 = vmatprep.mubr.f32.mxu0 %v324
    %476 = vmatmul.mubr.f32.gmra.mrb[0].mxu0 %v323
    %v477 = vpop.f32.mrb[0].mxu0
    %v478 = vadd.f32 0.0, %v477
    %v479 = vpop.f32.mrb[0].mxu0
    %480 = vmatprep.mubr.f32.mxu0 %v326
    %481 = vmatmul.mubr.f32.gmra.mrb[0].mxu0 %v325
    %v482 = vpop.f32.mrb[0].mxu0
    %v483 = vadd.f32 0.0, %v482
    %v484 = vpop.f32.mrb[0].mxu0
    %485 = vmatprep.mubr.f32.mxu0 %v328
    %486 = vmatmul.mubr.f32.gmra.mrb[0].mxu0 %v327
    %v487 = vpop.f32.mrb[0].mxu0
    %v488 = vadd.f32 0.0, %v487
    %v489 = vpop.f32.mrb[0].mxu0
    %490 = vmatprep.mubr.f32.mxu0 %v330
    %491 = vmatmul.mubr.f32.gmra.mrb[0].mxu0 %v329
    %v492 = vpop.f32.mrb[0].mxu0
    %v493 = vadd.f32 0.0, %v492
    %v494 = vpop.f32.mrb[0].mxu0
    %495 = vmatprep.mubr.f32.mxu0 %v332
    %496 = vmatmul.mubr.f32.gmra.mrb[0].mxu0 %v331
    %v497 = vpop.f32.mrb[0].mxu0
    %v498 = vadd.f32 0.0, %v497
    %v499 = vpop.f32.mrb[0].mxu0
    %500 = vmatprep.mubr.f32.mxu0 %v334
    %501 = vmatmul.mubr.f32.gmra.mrb[0].mxu0 %v333
    %v502 = vpop.f32.mrb[0].mxu0
    %v503 = vadd.f32 0.0, %v502
    %v504 = vpop.f32.mrb[0].mxu0
    %505 = vmatprep.mubr.f32.mxu0 %v336
    %506 = vmatmul.mubr.f32.gmra.mrb[0].mxu0 %v335
    %v507 = vpop.f32.mrb[0].mxu0
    %v508 = vadd.f32 0.0, %v507
    %v509 = vpop.f32.mrb[0].mxu0
    %510 = vmatprep.mubr.f32.mxu0 %v338
    %511 = vmatmul.mubr.f32.gmra.mrb[0].mxu0 %v337
    %v512 = vpop.f32.mrb[0].mxu0
    %v513 = vadd.f32 0.0, %v512
    %v514 = vpop.f32.mrb[0].mxu0
    %515 = vmatprep.mubr.f32.mxu0 %v340
    %516 = vmatmul.mubr.f32.gmra.mrb[0].mxu0 %v339
    %v517 = vpop.f32.mrb[0].mxu0
    %v518 = vadd.f32 0.0, %v517
    %v519 = vpop.f32.mrb[0].mxu0
    %520 = vmatprep.mubr.f32.mxu0 %v342
    %521 = vmatmul.mubr.f32.gmra.mrb[0].mxu0 %v341
    %v522 = vpop.f32.mrb[0].mxu0
    %v523 = vadd.f32 0.0, %v522
    %v524 = vpop.f32.mrb[0].mxu0
    %525 = vmatprep.mubr.f32.mxu0 %v344
    %526 = vmatmul.mubr.f32.gmra.mrb[0].mxu0 %v343
    %v527 = vpop.f32.mrb[0].mxu0
    %v528 = vadd.f32 0.0, %v527
    %v529 = vpop.f32.mrb[0].mxu0
    %530 = vmatprep.mubr.f32.mxu0 %v346
    %531 = vmatmul.mubr.f32.gmra.mrb[0].mxu0 %v345
    %v532 = vpop.f32.mrb[0].mxu0
    %v533 = vadd.f32 0.0, %v532
    %v534 = vpop.f32.mrb[0].mxu0
    %535 = vmatprep.mubr.f32.mxu0 %v348
    %536 = vmatmul.mubr.f32.gmra.mrb[0].mxu0 %v347
    %v537 = vpop.f32.mrb[0].mxu0
    %v538 = vadd.f32 0.0, %v537
    %v539 = vpop.f32.mrb[0].mxu0
    %540 = vmatprep.mubr.f32.mxu0 %v350
    %541 = vmatmul.mubr.f32.gmra.mrb[0].mxu0 %v349
    %v542 = vpop.f32.mrb[0].mxu0
    %v543 = vadd.f32 0.0, %v542
    %v544 = vpop.f32.mrb[0].mxu0
    %545 = vmatprep.mubr.f32.mxu0 %v352
    %546 = vmatmul.mubr.f32.gmra.mrb[0].mxu0 %v351
    %v547 = vpop.f32.mrb[0].mxu0
    %v548 = vadd.f32 0.0, %v547
    %v549 = vpop.f32.mrb[0].mxu0
    %550 = vmatprep.mubr.f32.mxu0 %v354
    %551 = vmatmul.mubr.f32.gmra.mrb[0].mxu0 %v353
    %v552 = vpop.f32.mrb[0].mxu0
    %v553 = vadd.f32 0.0, %v552
    %v554 = vpop.f32.mrb[0].mxu0
    %555 = vmatprep.mubr.f32.mxu0 %v356
    %556 = vmatmul.mubr.f32.gmra.mrb[0].mxu0 %v355
    %v557 = vpop.f32.mrb[0].mxu0
    %v558 = vadd.f32 0.0, %v557
    %v559 = vpop.f32.mrb[0].mxu0
    %560 = vmatprep.mubr.f32.mxu0 %v358
    %561 = vmatmul.mubr.f32.gmra.mrb[0].mxu0 %v357
    %v562 = vpop.f32.mrb[0].mxu0
    %v563 = vadd.f32 0.0, %v562
    %v564 = vpop.f32.mrb[0].mxu0
    %565 = vmatprep.mubr.f32.mxu0 %v360
    %566 = vmatmul.mubr.f32.gmra.mrb[0].mxu0 %v359
    %v567 = vpop.f32.mrb[0].mxu0
    %v568 = vadd.f32 0.0, %v567
    %v569 = vpop.f32.mrb[0].mxu0
    %570 = vmatprep.mubr.f32.mxu0 %v362
    %571 = vmatmul.mubr.f32.gmra.mrb[0].mxu0 %v361
    %v572 = vpop.f32.mrb[0].mxu0
    %v573 = vadd.f32 0.0, %v572
    %v574 = vpop.f32.mrb[0].mxu0
    %575 = vmatprep.mubr.f32.mxu0 %v364
    %576 = vmatmul.mubr.f32.gmra.mrb[0].mxu0 %v363
    %v577 = vpop.f32.mrb[0].mxu0
    %v578 = vadd.f32 0.0, %v577
    %v579 = vpop.f32.mrb[0].mxu0
    %580 = vmatprep.mubr.f32.mxu0 %v366
    %581 = vmatmul.mubr.f32.gmra.mrb[0].mxu0 %v365
    %v582 = vpop.f32.mrb[0].mxu0
    %v583 = vadd.f32 0.0, %v582
    %v584 = vpop.f32.mrb[0].mxu0
    %585 = vmatprep.mubr.f32.mxu0 %v368
    %586 = vmatmul.mubr.f32.gmra.mrb[0].mxu0 %v367
    %v587 = vpop.f32.mrb[0].mxu0
    %v588 = vadd.f32 0.0, %v587
    %v589 = vpop.f32.mrb[0].mxu0
    %590 = vmatprep.mubr.f32.mxu0 %v370
    %591 = vmatmul.mubr.f32.gmra.mrb[0].mxu0 %v369
    %v592 = vpop.f32.mrb[0].mxu0
    %v593 = vadd.f32 0.0, %v592
    %v594 = vpop.f32.mrb[0].mxu0
    %595 = vdwg.mxu0
    %v596 = vmax.f32 %v438, 0.0
    %v597 = vmax.f32 %v443, 0.0
    %v598 = vmax.f32 %v448, 0.0
    %v599 = vmax.f32 %v453, 0.0
    %v600 = vmax.f32 %v458, 0.0
    %v601 = vmax.f32 %v463, 0.0
    %v602 = vmax.f32 %v468, 0.0
    %v603 = vmax.f32 %v473, 0.0
    %v604 = vmax.f32 %v478, 0.0
    %v605 = vmax.f32 %v483, 0.0
    %v606 = vmax.f32 %v488, 0.0
    %v607 = vmax.f32 %v493, 0.0
    %v608 = vmax.f32 %v498, 0.0
    %v609 = vmax.f32 %v503, 0.0
    %v610 = vmax.f32 %v508, 0.0
    %v611 = vmax.f32 %v513, 0.0
    %v612 = vmax.f32 %v518, 0.0
    %v613 = vmax.f32 %v523, 0.0
    %v614 = vmax.f32 %v528, 0.0
    %v615 = vmax.f32 %v533, 0.0
    %v616 = vmax.f32 %v538, 0.0
    %v617 = vmax.f32 %v543, 0.0
    %v618 = vmax.f32 %v548, 0.0
    %v619 = vmax.f32 %v553, 0.0
    %v620 = vmax.f32 %v558, 0.0
    %v621 = vmax.f32 %v563, 0.0
    %v622 = vmax.f32 %v568, 0.0
    %v623 = vmax.f32 %v573, 0.0
    %v624 = vmax.f32 %v578, 0.0
    %v625 = vmax.f32 %v583, 0.0
    %v626 = vmax.f32 %v588, 0.0
    %v627 = vmax.f32 %v593, 0.0
    %s628 = scalar_lea.vmem [#allocation2], 512
    %v629 = vld [vmem:[%s628] sm:$0xff]
    %v630 = vld [vmem:[%s628 + $0x8] sm:$0xff]
    %v631 = vld [vmem:[%s628 + $0x10] sm:$0xff]
    %v632 = vld [vmem:[%s628 + $0x18] sm:$0xff]
    %v633 = vld [vmem:[%s628 + $0x20] sm:$0xff]
    %v634 = vld [vmem:[%s628 + $0x28] sm:$0xff]
    %v635 = vld [vmem:[%s628 + $0x30] sm:$0xff]
    %v636 = vld [vmem:[%s628 + $0x38] sm:$0xff]
    %v637 = vld [vmem:[%s628 + $0x40] sm:$0xff]
    %v638 = vld [vmem:[%s628 + $0x48] sm:$0xff]
    %v639 = vld [vmem:[%s628 + $0x50] sm:$0xff]
    %v640 = vld [vmem:[%s628 + $0x58] sm:$0xff]
    %v641 = vld [vmem:[%s628 + $0x60] sm:$0xff]
    %v642 = vld [vmem:[%s628 + $0x68] sm:$0xff]
    %v643 = vld [vmem:[%s628 + $0x70] sm:$0xff]
    %v644 = vld [vmem:[%s628 + $0x78] sm:$0xff]
    %v645 = vld [vmem:[%s628 + $0x80] sm:$0xff]
    %v646 = vld [vmem:[%s628 + $0x88] sm:$0xff]
    %v647 = vld [vmem:[%s628 + $0x90] sm:$0xff]
    %v648 = vld [vmem:[%s628 + $0x98] sm:$0xff]
    %v649 = vld [vmem:[%s628 + $0xa0] sm:$0xff]
    %v650 = vld [vmem:[%s628 + $0xa8] sm:$0xff]
    %v651 = vld [vmem:[%s628 + $0xb0] sm:$0xff]
    %v652 = vld [vmem:[%s628 + $0xb8] sm:$0xff]
    %v653 = vld [vmem:[%s628 + $0xc0] sm:$0xff]
    %v654 = vld [vmem:[%s628 + $0xc8] sm:$0xff]
    %v655 = vld [vmem:[%s628 + $0xd0] sm:$0xff]
    %v656 = vld [vmem:[%s628 + $0xd8] sm:$0xff]
    %v657 = vld [vmem:[%s628 + $0xe0] sm:$0xff]
    %v658 = vld [vmem:[%s628 + $0xe8] sm:$0xff]
    %v659 = vld [vmem:[%s628 + $0xf0] sm:$0xff]
    %v660 = vld [vmem:[%s628 + $0xf8] sm:$0xff]
    %v661 = vld [vmem:[%s628 + $0x100] sm:$0xff]
    %v662 = vld [vmem:[%s628 + $0x108] sm:$0xff]
    %v663 = vld [vmem:[%s628 + $0x110] sm:$0xff]
    %v664 = vld [vmem:[%s628 + $0x118] sm:$0xff]
    %v665 = vld [vmem:[%s628 + $0x120] sm:$0xff]
    %v666 = vld [vmem:[%s628 + $0x128] sm:$0xff]
    %v667 = vld [vmem:[%s628 + $0x130] sm:$0xff]
    %v668 = vld [vmem:[%s628 + $0x138] sm:$0xff]
    %v669 = vld [vmem:[%s628 + $0x140] sm:$0xff]
    %v670 = vld [vmem:[%s628 + $0x148] sm:$0xff]
    %v671 = vld [vmem:[%s628 + $0x150] sm:$0xff]
    %v672 = vld [vmem:[%s628 + $0x158] sm:$0xff]
    %v673 = vld [vmem:[%s628 + $0x160] sm:$0xff]
    %v674 = vld [vmem:[%s628 + $0x168] sm:$0xff]
    %v675 = vld [vmem:[%s628 + $0x170] sm:$0xff]
    %v676 = vld [vmem:[%s628 + $0x178] sm:$0xff]
    %v677 = vld [vmem:[%s628 + $0x180] sm:$0xff]
    %v678 = vld [vmem:[%s628 + $0x188] sm:$0xff]
    %v679 = vld [vmem:[%s628 + $0x190] sm:$0xff]
    %v680 = vld [vmem:[%s628 + $0x198] sm:$0xff]
    %v681 = vld [vmem:[%s628 + $0x1a0] sm:$0xff]
    %v682 = vld [vmem:[%s628 + $0x1a8] sm:$0xff]
    %v683 = vld [vmem:[%s628 + $0x1b0] sm:$0xff]
    %v684 = vld [vmem:[%s628 + $0x1b8] sm:$0xff]
    %v685 = vld [vmem:[%s628 + $0x1c0] sm:$0xff]
    %v686 = vld [vmem:[%s628 + $0x1c8] sm:$0xff]
    %v687 = vld [vmem:[%s628 + $0x1d0] sm:$0xff]
    %v688 = vld [vmem:[%s628 + $0x1d8] sm:$0xff]
    %v689 = vld [vmem:[%s628 + $0x1e0] sm:$0xff]
    %v690 = vld [vmem:[%s628 + $0x1e8] sm:$0xff]
    %v691 = vld [vmem:[%s628 + $0x1f0] sm:$0xff]
    %v692 = vld [vmem:[%s628 + $0x1f8] sm:$0xff]
    %693 = vmatprep.subr.mxu0 0.0
    %694 = vmatpush1.msra.mxu0 %v596
    %695 = vmatprep.subr.mxu0 0.0
    %696 = vmatpush1.msra.mxu0 %v597
    %697 = vmatprep.subr.mxu0 0.0
    %698 = vmatpush1.msra.mxu0 %v598
    %699 = vmatprep.subr.mxu0 0.0
    %700 = vmatpush1.msra.mxu0 %v599
    %701 = vmatprep.subr.mxu0 0.0
    %702 = vmatpush1.msra.mxu0 %v600
    %703 = vmatprep.subr.mxu0 0.0
    %704 = vmatpush1.msra.mxu0 %v601
    %705 = vmatprep.subr.mxu0 0.0
    %706 = vmatpush1.msra.mxu0 %v602
    %707 = vmatprep.subr.mxu0 0.0
    %708 = vmatpush1.msra.mxu0 %v603
    %709 = vmatprep.subr.mxu0 0.0
    %710 = vmatpush1.msra.mxu0 %v604
    %711 = vmatprep.subr.mxu0 0.0
    %712 = vmatpush1.msra.mxu0 %v605
    %713 = vmatprep.subr.mxu0 0.0
    %714 = vmatpush1.msra.mxu0 %v606
    %715 = vmatprep.subr.mxu0 0.0
    %716 = vmatpush1.msra.mxu0 %v607
    %717 = vmatprep.subr.mxu0 0.0
    %718 = vmatpush1.msra.mxu0 %v608
    %719 = vmatprep.subr.mxu0 0.0
    %720 = vmatpush1.msra.mxu0 %v609
    %721 = vmatprep.subr.mxu0 0.0
    %722 = vmatpush1.msra.mxu0 %v610
    %723 = vmatprep.subr.mxu0 0.0
    %724 = vmatpush1.msra.mxu0 %v611
    %725 = vmatprep.subr.mxu0 0.0
    %726 = vmatpush1.msra.mxu0 %v612
    %727 = vmatprep.subr.mxu0 0.0
    %728 = vmatpush1.msra.mxu0 %v613
    %729 = vmatprep.subr.mxu0 0.0
    %730 = vmatpush1.msra.mxu0 %v614
    %731 = vmatprep.subr.mxu0 0.0
    %732 = vmatpush1.msra.mxu0 %v615
    %733 = vmatprep.subr.mxu0 0.0
    %734 = vmatpush1.msra.mxu0 %v616
    %735 = vmatprep.subr.mxu0 0.0
    %736 = vmatpush1.msra.mxu0 %v617
    %737 = vmatprep.subr.mxu0 0.0
    %738 = vmatpush1.msra.mxu0 %v618
    %739 = vmatprep.subr.mxu0 0.0
    %740 = vmatpush1.msra.mxu0 %v619
    %741 = vmatprep.subr.mxu0 0.0
    %742 = vmatpush1.msra.mxu0 %v620
    %743 = vmatprep.subr.mxu0 0.0
    %744 = vmatpush1.msra.mxu0 %v621
    %745 = vmatprep.subr.mxu0 0.0
    %746 = vmatpush1.msra.mxu0 %v622
    %747 = vmatprep.subr.mxu0 0.0
    %748 = vmatpush1.msra.mxu0 %v623
    %749 = vmatprep.subr.mxu0 0.0
    %750 = vmatpush1.msra.mxu0 %v624
    %751 = vmatprep.subr.mxu0 0.0
    %752 = vmatpush1.msra.mxu0 %v625
    %753 = vmatprep.subr.mxu0 0.0
    %754 = vmatpush1.msra.mxu0 %v626
    %755 = vmatprep.subr.mxu0 0.0
    %756 = vmatpush1.msra.mxu0 %v627
    %757 = vmatprep.mubr.f32.mxu0 %v630
    %758 = vmatmul.mubr.f32.gmra.mrb[0].mxu0 %v629
    %v759 = vpop.f32.mrb[0].mxu0
    %v760 = vadd.f32 0.0, %v759
    %v761 = vpop.f32.mrb[0].mxu0
    %762 = vmatprep.mubr.f32.mxu0 %v632
    %763 = vmatmul.mubr.f32.gmra.mrb[0].mxu0 %v631
    %v764 = vpop.f32.mrb[0].mxu0
    %v765 = vadd.f32 0.0, %v764
    %v766 = vpop.f32.mrb[0].mxu0
    %767 = vmatprep.mubr.f32.mxu0 %v634
    %768 = vmatmul.mubr.f32.gmra.mrb[0].mxu0 %v633
    %v769 = vpop.f32.mrb[0].mxu0
    %v770 = vadd.f32 0.0, %v769
    %v771 = vpop.f32.mrb[0].mxu0
    %772 = vmatprep.mubr.f32.mxu0 %v636
    %773 = vmatmul.mubr.f32.gmra.mrb[0].mxu0 %v635
    %v774 = vpop.f32.mrb[0].mxu0
    %v775 = vadd.f32 0.0, %v774
    %v776 = vpop.f32.mrb[0].mxu0
    %777 = vmatprep.mubr.f32.mxu0 %v638
    %778 = vmatmul.mubr.f32.gmra.mrb[0].mxu0 %v637
    %v779 = vpop.f32.mrb[0].mxu0
    %v780 = vadd.f32 0.0, %v779
    %v781 = vpop.f32.mrb[0].mxu0
    %782 = vmatprep.mubr.f32.mxu0 %v640
    %783 = vmatmul.mubr.f32.gmra.mrb[0].mxu0 %v639
    %v784 = vpop.f32.mrb[0].mxu0
    %v785 = vadd.f32 0.0, %v784
    %v786 = vpop.f32.mrb[0].mxu0
    %787 = vmatprep.mubr.f32.mxu0 %v642
    %788 = vmatmul.mubr.f32.gmra.mrb[0].mxu0 %v641
    %v789 = vpop.f32.mrb[0].mxu0
    %v790 = vadd.f32 0.0, %v789
    %v791 = vpop.f32.mrb[0].mxu0
    %792 = vmatprep.mubr.f32.mxu0 %v644
    %793 = vmatmul.mubr.f32.gmra.mrb[0].mxu0 %v643
    %v794 = vpop.f32.mrb[0].mxu0
    %v795 = vadd.f32 0.0, %v794
    %v796 = vpop.f32.mrb[0].mxu0
    %797 = vmatprep.mubr.f32.mxu0 %v646
    %798 = vmatmul.mubr.f32.gmra.mrb[0].mxu0 %v645
    %v799 = vpop.f32.mrb[0].mxu0
    %v800 = vadd.f32 0.0, %v799
    %v801 = vpop.f32.mrb[0].mxu0
    %802 = vmatprep.mubr.f32.mxu0 %v648
    %803 = vmatmul.mubr.f32.gmra.mrb[0].mxu0 %v647
    %v804 = vpop.f32.mrb[0].mxu0
    %v805 = vadd.f32 0.0, %v804
    %v806 = vpop.f32.mrb[0].mxu0
    %807 = vmatprep.mubr.f32.mxu0 %v650
    %808 = vmatmul.mubr.f32.gmra.mrb[0].mxu0 %v649
    %v809 = vpop.f32.mrb[0].mxu0
    %v810 = vadd.f32 0.0, %v809
    %v811 = vpop.f32.mrb[0].mxu0
    %812 = vmatprep.mubr.f32.mxu0 %v652
    %813 = vmatmul.mubr.f32.gmra.mrb[0].mxu0 %v651
    %v814 = vpop.f32.mrb[0].mxu0
    %v815 = vadd.f32 0.0, %v814
    %v816 = vpop.f32.mrb[0].mxu0
    %817 = vmatprep.mubr.f32.mxu0 %v654
    %818 = vmatmul.mubr.f32.gmra.mrb[0].mxu0 %v653
    %v819 = vpop.f32.mrb[0].mxu0
    %v820 = vadd.f32 0.0, %v819
    %v821 = vpop.f32.mrb[0].mxu0
    %822 = vmatprep.mubr.f32.mxu0 %v656
    %823 = vmatmul.mubr.f32.gmra.mrb[0].mxu0 %v655
    %v824 = vpop.f32.mrb[0].mxu0
    %v825 = vadd.f32 0.0, %v824
    %v826 = vpop.f32.mrb[0].mxu0
    %827 = vmatprep.mubr.f32.mxu0 %v658
    %828 = vmatmul.mubr.f32.gmra.mrb[0].mxu0 %v657
    %v829 = vpop.f32.mrb[0].mxu0
    %v830 = vadd.f32 0.0, %v829
    %v831 = vpop.f32.mrb[0].mxu0
    %832 = vmatprep.mubr.f32.mxu0 %v660
    %833 = vmatmul.mubr.f32.gmra.mrb[0].mxu0 %v659
    %v834 = vpop.f32.mrb[0].mxu0
    %v835 = vadd.f32 0.0, %v834
    %v836 = vpop.f32.mrb[0].mxu0
    %837 = vmatprep.mubr.f32.mxu0 %v662
    %838 = vmatmul.mubr.f32.gmra.mrb[0].mxu0 %v661
    %v839 = vpop.f32.mrb[0].mxu0
    %v840 = vadd.f32 0.0, %v839
    %v841 = vpop.f32.mrb[0].mxu0
    %842 = vmatprep.mubr.f32.mxu0 %v664
    %843 = vmatmul.mubr.f32.gmra.mrb[0].mxu0 %v663
    %v844 = vpop.f32.mrb[0].mxu0
    %v845 = vadd.f32 0.0, %v844
    %v846 = vpop.f32.mrb[0].mxu0
    %847 = vmatprep.mubr.f32.mxu0 %v666
    %848 = vmatmul.mubr.f32.gmra.mrb[0].mxu0 %v665
    %v849 = vpop.f32.mrb[0].mxu0
    %v850 = vadd.f32 0.0, %v849
    %v851 = vpop.f32.mrb[0].mxu0
    %852 = vmatprep.mubr.f32.mxu0 %v668
    %853 = vmatmul.mubr.f32.gmra.mrb[0].mxu0 %v667
    %v854 = vpop.f32.mrb[0].mxu0
    %v855 = vadd.f32 0.0, %v854
    %v856 = vpop.f32.mrb[0].mxu0
    %857 = vmatprep.mubr.f32.mxu0 %v670
    %858 = vmatmul.mubr.f32.gmra.mrb[0].mxu0 %v669
    %v859 = vpop.f32.mrb[0].mxu0
    %v860 = vadd.f32 0.0, %v859
    %v861 = vpop.f32.mrb[0].mxu0
    %862 = vmatprep.mubr.f32.mxu0 %v672
    %863 = vmatmul.mubr.f32.gmra.mrb[0].mxu0 %v671
    %v864 = vpop.f32.mrb[0].mxu0
    %v865 = vadd.f32 0.0, %v864
    %v866 = vpop.f32.mrb[0].mxu0
    %867 = vmatprep.mubr.f32.mxu0 %v674
    %868 = vmatmul.mubr.f32.gmra.mrb[0].mxu0 %v673
    %v869 = vpop.f32.mrb[0].mxu0
    %v870 = vadd.f32 0.0, %v869
    %v871 = vpop.f32.mrb[0].mxu0
    %872 = vmatprep.mubr.f32.mxu0 %v676
    %873 = vmatmul.mubr.f32.gmra.mrb[0].mxu0 %v675
    %v874 = vpop.f32.mrb[0].mxu0
    %v875 = vadd.f32 0.0, %v874
    %v876 = vpop.f32.mrb[0].mxu0
    %877 = vmatprep.mubr.f32.mxu0 %v678
    %878 = vmatmul.mubr.f32.gmra.mrb[0].mxu0 %v677
    %v879 = vpop.f32.mrb[0].mxu0
    %v880 = vadd.f32 0.0, %v879
    %v881 = vpop.f32.mrb[0].mxu0
    %882 = vmatprep.mubr.f32.mxu0 %v680
    %883 = vmatmul.mubr.f32.gmra.mrb[0].mxu0 %v679
    %v884 = vpop.f32.mrb[0].mxu0
    %v885 = vadd.f32 0.0, %v884
    %v886 = vpop.f32.mrb[0].mxu0
    %887 = vmatprep.mubr.f32.mxu0 %v682
    %888 = vmatmul.mubr.f32.gmra.mrb[0].mxu0 %v681
    %v889 = vpop.f32.mrb[0].mxu0
    %v890 = vadd.f32 0.0, %v889
    %v891 = vpop.f32.mrb[0].mxu0
    %892 = vmatprep.mubr.f32.mxu0 %v684
    %893 = vmatmul.mubr.f32.gmra.mrb[0].mxu0 %v683
    %v894 = vpop.f32.mrb[0].mxu0
    %v895 = vadd.f32 0.0, %v894
    %v896 = vpop.f32.mrb[0].mxu0
    %897 = vmatprep.mubr.f32.mxu0 %v686
    %898 = vmatmul.mubr.f32.gmra.mrb[0].mxu0 %v685
    %v899 = vpop.f32.mrb[0].mxu0
    %v900 = vadd.f32 0.0, %v899
    %v901 = vpop.f32.mrb[0].mxu0
    %902 = vmatprep.mubr.f32.mxu0 %v688
    %903 = vmatmul.mubr.f32.gmra.mrb[0].mxu0 %v687
    %v904 = vpop.f32.mrb[0].mxu0
    %v905 = vadd.f32 0.0, %v904
    %v906 = vpop.f32.mrb[0].mxu0
    %907 = vmatprep.mubr.f32.mxu0 %v690
    %908 = vmatmul.mubr.f32.gmra.mrb[0].mxu0 %v689
    %v909 = vpop.f32.mrb[0].mxu0
    %v910 = vadd.f32 0.0, %v909
    %v911 = vpop.f32.mrb[0].mxu0
    %912 = vmatprep.mubr.f32.mxu0 %v692
    %913 = vmatmul.mubr.f32.gmra.mrb[0].mxu0 %v691
    %v914 = vpop.f32.mrb[0].mxu0
    %v915 = vadd.f32 0.0, %v914
    %v916 = vpop.f32.mrb[0].mxu0
    %917 = vdwg.mxu0
    %v918 = vmax.f32 %v760, 0.0
    %v919 = vmax.f32 %v765, 0.0
    %v920 = vmax.f32 %v770, 0.0
    %v921 = vmax.f32 %v775, 0.0
    %v922 = vmax.f32 %v780, 0.0
    %v923 = vmax.f32 %v785, 0.0
    %v924 = vmax.f32 %v790, 0.0
    %v925 = vmax.f32 %v795, 0.0
    %v926 = vmax.f32 %v800, 0.0
    %v927 = vmax.f32 %v805, 0.0
    %v928 = vmax.f32 %v810, 0.0
    %v929 = vmax.f32 %v815, 0.0
    %v930 = vmax.f32 %v820, 0.0
    %v931 = vmax.f32 %v825, 0.0
    %v932 = vmax.f32 %v830, 0.0
    %v933 = vmax.f32 %v835, 0.0
    %v934 = vmax.f32 %v840, 0.0
    %v935 = vmax.f32 %v845, 0.0
    %v936 = vmax.f32 %v850, 0.0
    %v937 = vmax.f32 %v855, 0.0
    %v938 = vmax.f32 %v860, 0.0
    %v939 = vmax.f32 %v865, 0.0
    %v940 = vmax.f32 %v870, 0.0
    %v941 = vmax.f32 %v875, 0.0
    %v942 = vmax.f32 %v880, 0.0
    %v943 = vmax.f32 %v885, 0.0
    %v944 = vmax.f32 %v890, 0.0
    %v945 = vmax.f32 %v895, 0.0
    %v946 = vmax.f32 %v900, 0.0
    %v947 = vmax.f32 %v905, 0.0
    %v948 = vmax.f32 %v910, 0.0
    %v949 = vmax.f32 %v915, 0.0
    %s950 = scalar_lea.vmem [#allocation2], 1024
    %v951 = vld [vmem:[%s950] sm:$0xff]
    %v952 = vld [vmem:[%s950 + $0x8] sm:$0xff]
    %v953 = vld [vmem:[%s950 + $0x10] sm:$0xff]
    %v954 = vld [vmem:[%s950 + $0x18] sm:$0xff]
    %v955 = vld [vmem:[%s950 + $0x20] sm:$0xff]
    %v956 = vld [vmem:[%s950 + $0x28] sm:$0xff]
    %v957 = vld [vmem:[%s950 + $0x30] sm:$0xff]
    %v958 = vld [vmem:[%s950 + $0x38] sm:$0xff]
    %v959 = vld [vmem:[%s950 + $0x40] sm:$0xff]
    %v960 = vld [vmem:[%s950 + $0x48] sm:$0xff]
    %v961 = vld [vmem:[%s950 + $0x50] sm:$0xff]
    %v962 = vld [vmem:[%s950 + $0x58] sm:$0xff]
    %v963 = vld [vmem:[%s950 + $0x60] sm:$0xff]
    %v964 = vld [vmem:[%s950 + $0x68] sm:$0xff]
    %v965 = vld [vmem:[%s950 + $0x70] sm:$0xff]
    %v966 = vld [vmem:[%s950 + $0x78] sm:$0xff]
    %v967 = vld [vmem:[%s950 + $0x80] sm:$0xff]
    %v968 = vld [vmem:[%s950 + $0x88] sm:$0xff]
    %v969 = vld [vmem:[%s950 + $0x90] sm:$0xff]
    %v970 = vld [vmem:[%s950 + $0x98] sm:$0xff]
    %v971 = vld [vmem:[%s950 + $0xa0] sm:$0xff]
    %v972 = vld [vmem:[%s950 + $0xa8] sm:$0xff]
    %v973 = vld [vmem:[%s950 + $0xb0] sm:$0xff]
    %v974 = vld [vmem:[%s950 + $0xb8] sm:$0xff]
    %v975 = vld [vmem:[%s950 + $0xc0] sm:$0xff]
    %v976 = vld [vmem:[%s950 + $0xc8] sm:$0xff]
    %v977 = vld [vmem:[%s950 + $0xd0] sm:$0xff]
    %v978 = vld [vmem:[%s950 + $0xd8] sm:$0xff]
    %v979 = vld [vmem:[%s950 + $0xe0] sm:$0xff]
    %v980 = vld [vmem:[%s950 + $0xe8] sm:$0xff]
    %v981 = vld [vmem:[%s950 + $0xf0] sm:$0xff]
    %v982 = vld [vmem:[%s950 + $0xf8] sm:$0xff]
    %v983 = vld [vmem:[%s950 + $0x100] sm:$0xff]
    %v984 = vld [vmem:[%s950 + $0x108] sm:$0xff]
    %v985 = vld [vmem:[%s950 + $0x110] sm:$0xff]
    %v986 = vld [vmem:[%s950 + $0x118] sm:$0xff]
    %v987 = vld [vmem:[%s950 + $0x120] sm:$0xff]
    %v988 = vld [vmem:[%s950 + $0x128] sm:$0xff]
    %v989 = vld [vmem:[%s950 + $0x130] sm:$0xff]
    %v990 = vld [vmem:[%s950 + $0x138] sm:$0xff]
    %v991 = vld [vmem:[%s950 + $0x140] sm:$0xff]
    %v992 = vld [vmem:[%s950 + $0x148] sm:$0xff]
    %v993 = vld [vmem:[%s950 + $0x150] sm:$0xff]
    %v994 = vld [vmem:[%s950 + $0x158] sm:$0xff]
    %v995 = vld [vmem:[%s950 + $0x160] sm:$0xff]
    %v996 = vld [vmem:[%s950 + $0x168] sm:$0xff]
    %v997 = vld [vmem:[%s950 + $0x170] sm:$0xff]
    %v998 = vld [vmem:[%s950 + $0x178] sm:$0xff]
    %v999 = vld [vmem:[%s950 + $0x180] sm:$0xff]
    %v1000 = vld [vmem:[%s950 + $0x188] sm:$0xff]
    %v1001 = vld [vmem:[%s950 + $0x190] sm:$0xff]
    %v1002 = vld [vmem:[%s950 + $0x198] sm:$0xff]
    %v1003 = vld [vmem:[%s950 + $0x1a0] sm:$0xff]
    %v1004 = vld [vmem:[%s950 + $0x1a8] sm:$0xff]
    %v1005 = vld [vmem:[%s950 + $0x1b0] sm:$0xff]
    %v1006 = vld [vmem:[%s950 + $0x1b8] sm:$0xff]
    %v1007 = vld [vmem:[%s950 + $0x1c0] sm:$0xff]
    %v1008 = vld [vmem:[%s950 + $0x1c8] sm:$0xff]
    %v1009 = vld [vmem:[%s950 + $0x1d0] sm:$0xff]
    %v1010 = vld [vmem:[%s950 + $0x1d8] sm:$0xff]
    %v1011 = vld [vmem:[%s950 + $0x1e0] sm:$0xff]
    %v1012 = vld [vmem:[%s950 + $0x1e8] sm:$0xff]
    %v1013 = vld [vmem:[%s950 + $0x1f0] sm:$0xff]
    %v1014 = vld [vmem:[%s950 + $0x1f8] sm:$0xff]
    %1015 = vmatprep.subr.mxu0 0.0
    %1016 = vmatpush1.msra.mxu0 %v918
    %1017 = vmatprep.subr.mxu0 0.0
    %1018 = vmatpush1.msra.mxu0 %v919
    %1019 = vmatprep.subr.mxu0 0.0
    %1020 = vmatpush1.msra.mxu0 %v920
    %1021 = vmatprep.subr.mxu0 0.0
    %1022 = vmatpush1.msra.mxu0 %v921
    %1023 = vmatprep.subr.mxu0 0.0
    %1024 = vmatpush1.msra.mxu0 %v922
    %1025 = vmatprep.subr.mxu0 0.0
    %1026 = vmatpush1.msra.mxu0 %v923
    %1027 = vmatprep.subr.mxu0 0.0
    %1028 = vmatpush1.msra.mxu0 %v924
    %1029 = vmatprep.subr.mxu0 0.0
    %1030 = vmatpush1.msra.mxu0 %v925
    %1031 = vmatprep.subr.mxu0 0.0
    %1032 = vmatpush1.msra.mxu0 %v926
    %1033 = vmatprep.subr.mxu0 0.0
    %1034 = vmatpush1.msra.mxu0 %v927
    %1035 = vmatprep.subr.mxu0 0.0
    %1036 = vmatpush1.msra.mxu0 %v928
    %1037 = vmatprep.subr.mxu0 0.0
    %1038 = vmatpush1.msra.mxu0 %v929
    %1039 = vmatprep.subr.mxu0 0.0
    %1040 = vmatpush1.msra.mxu0 %v930
    %1041 = vmatprep.subr.mxu0 0.0
    %1042 = vmatpush1.msra.mxu0 %v931
    %1043 = vmatprep.subr.mxu0 0.0
    %1044 = vmatpush1.msra.mxu0 %v932
    %1045 = vmatprep.subr.mxu0 0.0
    %1046 = vmatpush1.msra.mxu0 %v933
    %1047 = vmatprep.subr.mxu0 0.0
    %1048 = vmatpush1.msra.mxu0 %v934
    %1049 = vmatprep.subr.mxu0 0.0
    %1050 = vmatpush1.msra.mxu0 %v935
    %1051 = vmatprep.subr.mxu0 0.0
    %1052 = vmatpush1.msra.mxu0 %v936
    %1053 = vmatprep.subr.mxu0 0.0
    %1054 = vmatpush1.msra.mxu0 %v937
    %1055 = vmatprep.subr.mxu0 0.0
    %1056 = vmatpush1.msra.mxu0 %v938
    %1057 = vmatprep.subr.mxu0 0.0
    %1058 = vmatpush1.msra.mxu0 %v939
    %1059 = vmatprep.subr.mxu0 0.0
    %1060 = vmatpush1.msra.mxu0 %v940
    %1061 = vmatprep.subr.mxu0 0.0
    %1062 = vmatpush1.msra.mxu0 %v941
    %1063 = vmatprep.subr.mxu0 0.0
    %1064 = vmatpush1.msra.mxu0 %v942
    %1065 = vmatprep.subr.mxu0 0.0
    %1066 = vmatpush1.msra.mxu0 %v943
    %1067 = vmatprep.subr.mxu0 0.0
    %1068 = vmatpush1.msra.mxu0 %v944
    %1069 = vmatprep.subr.mxu0 0.0
    %1070 = vmatpush1.msra.mxu0 %v945
    %1071 = vmatprep.subr.mxu0 0.0
    %1072 = vmatpush1.msra.mxu0 %v946
    %1073 = vmatprep.subr.mxu0 0.0
    %1074 = vmatpush1.msra.mxu0 %v947
    %1075 = vmatprep.subr.mxu0 0.0
    %1076 = vmatpush1.msra.mxu0 %v948
    %1077 = vmatprep.subr.mxu0 0.0
    %1078 = vmatpush1.msra.mxu0 %v949
    %1079 = vmatprep.mubr.f32.mxu0 %v952
    %1080 = vmatmul.mubr.f32.gmra.mrb[0].mxu0 %v951
    %v1081 = vpop.f32.mrb[0].mxu0
    %v1082 = vadd.f32 0.0, %v1081
    %v1083 = vpop.f32.mrb[0].mxu0
    %1084 = vmatprep.mubr.f32.mxu0 %v954
    %1085 = vmatmul.mubr.f32.gmra.mrb[0].mxu0 %v953
    %v1086 = vpop.f32.mrb[0].mxu0
    %v1087 = vadd.f32 0.0, %v1086
    %v1088 = vpop.f32.mrb[0].mxu0
    %1089 = vmatprep.mubr.f32.mxu0 %v956
    %1090 = vmatmul.mubr.f32.gmra.mrb[0].mxu0 %v955
    %v1091 = vpop.f32.mrb[0].mxu0
    %v1092 = vadd.f32 0.0, %v1091
    %v1093 = vpop.f32.mrb[0].mxu0
    %1094 = vmatprep.mubr.f32.mxu0 %v958
    %1095 = vmatmul.mubr.f32.gmra.mrb[0].mxu0 %v957
    %v1096 = vpop.f32.mrb[0].mxu0
    %v1097 = vadd.f32 0.0, %v1096
    %v1098 = vpop.f32.mrb[0].mxu0
    %1099 = vmatprep.mubr.f32.mxu0 %v960
    %1100 = vmatmul.mubr.f32.gmra.mrb[0].mxu0 %v959
    %v1101 = vpop.f32.mrb[0].mxu0
    %v1102 = vadd.f32 0.0, %v1101
    %v1103 = vpop.f32.mrb[0].mxu0
    %1104 = vmatprep.mubr.f32.mxu0 %v962
    %1105 = vmatmul.mubr.f32.gmra.mrb[0].mxu0 %v961
    %v1106 = vpop.f32.mrb[0].mxu0
    %v1107 = vadd.f32 0.0, %v1106
    %v1108 = vpop.f32.mrb[0].mxu0
    %1109 = vmatprep.mubr.f32.mxu0 %v964
    %1110 = vmatmul.mubr.f32.gmra.mrb[0].mxu0 %v963
    %v1111 = vpop.f32.mrb[0].mxu0
    %v1112 = vadd.f32 0.0, %v1111
    %v1113 = vpop.f32.mrb[0].mxu0
    %1114 = vmatprep.mubr.f32.mxu0 %v966
    %1115 = vmatmul.mubr.f32.gmra.mrb[0].mxu0 %v965
    %v1116 = vpop.f32.mrb[0].mxu0
    %v1117 = vadd.f32 0.0, %v1116
    %v1118 = vpop.f32.mrb[0].mxu0
    %1119 = vmatprep.mubr.f32.mxu0 %v968
    %1120 = vmatmul.mubr.f32.gmra.mrb[0].mxu0 %v967
    %v1121 = vpop.f32.mrb[0].mxu0
    %v1122 = vadd.f32 0.0, %v1121
    %v1123 = vpop.f32.mrb[0].mxu0
    %1124 = vmatprep.mubr.f32.mxu0 %v970
    %1125 = vmatmul.mubr.f32.gmra.mrb[0].mxu0 %v969
    %v1126 = vpop.f32.mrb[0].mxu0
    %v1127 = vadd.f32 0.0, %v1126
    %v1128 = vpop.f32.mrb[0].mxu0
    %1129 = vmatprep.mubr.f32.mxu0 %v972
    %1130 = vmatmul.mubr.f32.gmra.mrb[0].mxu0 %v971
    %v1131 = vpop.f32.mrb[0].mxu0
    %v1132 = vadd.f32 0.0, %v1131
    %v1133 = vpop.f32.mrb[0].mxu0
    %1134 = vmatprep.mubr.f32.mxu0 %v974
    %1135 = vmatmul.mubr.f32.gmra.mrb[0].mxu0 %v973
    %v1136 = vpop.f32.mrb[0].mxu0
    %v1137 = vadd.f32 0.0, %v1136
    %v1138 = vpop.f32.mrb[0].mxu0
    %1139 = vmatprep.mubr.f32.mxu0 %v976
    %1140 = vmatmul.mubr.f32.gmra.mrb[0].mxu0 %v975
    %v1141 = vpop.f32.mrb[0].mxu0
    %v1142 = vadd.f32 0.0, %v1141
    %v1143 = vpop.f32.mrb[0].mxu0
    %1144 = vmatprep.mubr.f32.mxu0 %v978
    %1145 = vmatmul.mubr.f32.gmra.mrb[0].mxu0 %v977
    %v1146 = vpop.f32.mrb[0].mxu0
    %v1147 = vadd.f32 0.0, %v1146
    %v1148 = vpop.f32.mrb[0].mxu0
    %1149 = vmatprep.mubr.f32.mxu0 %v980
    %1150 = vmatmul.mubr.f32.gmra.mrb[0].mxu0 %v979
    %v1151 = vpop.f32.mrb[0].mxu0
    %v1152 = vadd.f32 0.0, %v1151
    %v1153 = vpop.f32.mrb[0].mxu0
    %1154 = vmatprep.mubr.f32.mxu0 %v982
    %1155 = vmatmul.mubr.f32.gmra.mrb[0].mxu0 %v981
    %v1156 = vpop.f32.mrb[0].mxu0
    %v1157 = vadd.f32 0.0, %v1156
    %v1158 = vpop.f32.mrb[0].mxu0
    %1159 = vmatprep.mubr.f32.mxu0 %v984
    %1160 = vmatmul.mubr.f32.gmra.mrb[0].mxu0 %v983
    %v1161 = vpop.f32.mrb[0].mxu0
    %v1162 = vadd.f32 0.0, %v1161
    %v1163 = vpop.f32.mrb[0].mxu0
    %1164 = vmatprep.mubr.f32.mxu0 %v986
    %1165 = vmatmul.mubr.f32.gmra.mrb[0].mxu0 %v985
    %v1166 = vpop.f32.mrb[0].mxu0
    %v1167 = vadd.f32 0.0, %v1166
    %v1168 = vpop.f32.mrb[0].mxu0
    %1169 = vmatprep.mubr.f32.mxu0 %v988
    %1170 = vmatmul.mubr.f32.gmra.mrb[0].mxu0 %v987
    %v1171 = vpop.f32.mrb[0].mxu0
    %v1172 = vadd.f32 0.0, %v1171
    %v1173 = vpop.f32.mrb[0].mxu0
    %1174 = vmatprep.mubr.f32.mxu0 %v990
    %1175 = vmatmul.mubr.f32.gmra.mrb[0].mxu0 %v989
    %v1176 = vpop.f32.mrb[0].mxu0
    %v1177 = vadd.f32 0.0, %v1176
    %v1178 = vpop.f32.mrb[0].mxu0
    %1179 = vmatprep.mubr.f32.mxu0 %v992
    %1180 = vmatmul.mubr.f32.gmra.mrb[0].mxu0 %v991
    %v1181 = vpop.f32.mrb[0].mxu0
    %v1182 = vadd.f32 0.0, %v1181
    %v1183 = vpop.f32.mrb[0].mxu0
    %1184 = vmatprep.mubr.f32.mxu0 %v994
    %1185 = vmatmul.mubr.f32.gmra.mrb[0].mxu0 %v993
    %v1186 = vpop.f32.mrb[0].mxu0
    %v1187 = vadd.f32 0.0, %v1186
    %v1188 = vpop.f32.mrb[0].mxu0
    %1189 = vmatprep.mubr.f32.mxu0 %v996
    %1190 = vmatmul.mubr.f32.gmra.mrb[0].mxu0 %v995
    %v1191 = vpop.f32.mrb[0].mxu0
    %v1192 = vadd.f32 0.0, %v1191
    %v1193 = vpop.f32.mrb[0].mxu0
    %1194 = vmatprep.mubr.f32.mxu0 %v998
    %1195 = vmatmul.mubr.f32.gmra.mrb[0].mxu0 %v997
    %v1196 = vpop.f32.mrb[0].mxu0
    %v1197 = vadd.f32 0.0, %v1196
    %v1198 = vpop.f32.mrb[0].mxu0
    %1199 = vmatprep.mubr.f32.mxu0 %v1000
    %1200 = vmatmul.mubr.f32.gmra.mrb[0].mxu0 %v999
    %v1201 = vpop.f32.mrb[0].mxu0
    %v1202 = vadd.f32 0.0, %v1201
    %v1203 = vpop.f32.mrb[0].mxu0
    %1204 = vmatprep.mubr.f32.mxu0 %v1002
    %1205 = vmatmul.mubr.f32.gmra.mrb[0].mxu0 %v1001
    %v1206 = vpop.f32.mrb[0].mxu0
    %v1207 = vadd.f32 0.0, %v1206
    %v1208 = vpop.f32.mrb[0].mxu0
    %1209 = vmatprep.mubr.f32.mxu0 %v1004
    %1210 = vmatmul.mubr.f32.gmra.mrb[0].mxu0 %v1003
    %v1211 = vpop.f32.mrb[0].mxu0
    %v1212 = vadd.f32 0.0, %v1211
    %v1213 = vpop.f32.mrb[0].mxu0
    %1214 = vmatprep.mubr.f32.mxu0 %v1006
    %1215 = vmatmul.mubr.f32.gmra.mrb[0].mxu0 %v1005
    %v1216 = vpop.f32.mrb[0].mxu0
    %v1217 = vadd.f32 0.0, %v1216
    %v1218 = vpop.f32.mrb[0].mxu0
    %1219 = vmatprep.mubr.f32.mxu0 %v1008
    %1220 = vmatmul.mubr.f32.gmra.mrb[0].mxu0 %v1007
    %v1221 = vpop.f32.mrb[0].mxu0
    %v1222 = vadd.f32 0.0, %v1221
    %v1223 = vpop.f32.mrb[0].mxu0
    %1224 = vmatprep.mubr.f32.mxu0 %v1010
    %1225 = vmatmul.mubr.f32.gmra.mrb[0].mxu0 %v1009
    %v1226 = vpop.f32.mrb[0].mxu0
    %v1227 = vadd.f32 0.0, %v1226
    %v1228 = vpop.f32.mrb[0].mxu0
    %1229 = vmatprep.mubr.f32.mxu0 %v1012
    %1230 = vmatmul.mubr.f32.gmra.mrb[0].mxu0 %v1011
    %v1231 = vpop.f32.mrb[0].mxu0
    %v1232 = vadd.f32 0.0, %v1231
    %v1233 = vpop.f32.mrb[0].mxu0
    %1234 = vmatprep.mubr.f32.mxu0 %v1014
    %1235 = vmatmul.mubr.f32.gmra.mrb[0].mxu0 %v1013
    %v1236 = vpop.f32.mrb[0].mxu0
    %v1237 = vadd.f32 0.0, %v1236
    %v1238 = vpop.f32.mrb[0].mxu0
    %1239 = vdwg.mxu0
    %v1240 = vmax.f32 %v1082, 0.0
    %v1241 = vmax.f32 %v1087, 0.0
    %v1242 = vmax.f32 %v1092, 0.0
    %v1243 = vmax.f32 %v1097, 0.0
    %v1244 = vmax.f32 %v1102, 0.0
    %v1245 = vmax.f32 %v1107, 0.0
    %v1246 = vmax.f32 %v1112, 0.0
    %v1247 = vmax.f32 %v1117, 0.0
    %v1248 = vmax.f32 %v1122, 0.0
    %v1249 = vmax.f32 %v1127, 0.0
    %v1250 = vmax.f32 %v1132, 0.0
    %v1251 = vmax.f32 %v1137, 0.0
    %v1252 = vmax.f32 %v1142, 0.0
    %v1253 = vmax.f32 %v1147, 0.0
    %v1254 = vmax.f32 %v1152, 0.0
    %v1255 = vmax.f32 %v1157, 0.0
    %v1256 = vmax.f32 %v1162, 0.0
    %v1257 = vmax.f32 %v1167, 0.0
    %v1258 = vmax.f32 %v1172, 0.0
    %v1259 = vmax.f32 %v1177, 0.0
    %v1260 = vmax.f32 %v1182, 0.0
    %v1261 = vmax.f32 %v1187, 0.0
    %v1262 = vmax.f32 %v1192, 0.0
    %v1263 = vmax.f32 %v1197, 0.0
    %v1264 = vmax.f32 %v1202, 0.0
    %v1265 = vmax.f32 %v1207, 0.0
    %v1266 = vmax.f32 %v1212, 0.0
    %v1267 = vmax.f32 %v1217, 0.0
    %v1268 = vmax.f32 %v1222, 0.0
    %v1269 = vmax.f32 %v1227, 0.0
    %v1270 = vmax.f32 %v1232, 0.0
    %v1271 = vmax.f32 %v1237, 0.0
    %s1272 = scalar_lea.vmem [#allocation2], 1536
    %v1273 = vld [vmem:[%s1272] sm:$0xff]
    %v1274 = vld [vmem:[%s1272 + $0x8] sm:$0xff]
    %v1275 = vld [vmem:[%s1272 + $0x10] sm:$0xff]
    %v1276 = vld [vmem:[%s1272 + $0x18] sm:$0xff]
    %v1277 = vld [vmem:[%s1272 + $0x20] sm:$0xff]
    %v1278 = vld [vmem:[%s1272 + $0x28] sm:$0xff]
    %v1279 = vld [vmem:[%s1272 + $0x30] sm:$0xff]
    %v1280 = vld [vmem:[%s1272 + $0x38] sm:$0xff]
    %v1281 = vld [vmem:[%s1272 + $0x40] sm:$0xff]
    %v1282 = vld [vmem:[%s1272 + $0x48] sm:$0xff]
    %v1283 = vld [vmem:[%s1272 + $0x50] sm:$0xff]
    %v1284 = vld [vmem:[%s1272 + $0x58] sm:$0xff]
    %v1285 = vld [vmem:[%s1272 + $0x60] sm:$0xff]
    %v1286 = vld [vmem:[%s1272 + $0x68] sm:$0xff]
    %v1287 = vld [vmem:[%s1272 + $0x70] sm:$0xff]
    %v1288 = vld [vmem:[%s1272 + $0x78] sm:$0xff]
    %v1289 = vld [vmem:[%s1272 + $0x80] sm:$0xff]
    %v1290 = vld [vmem:[%s1272 + $0x88] sm:$0xff]
    %v1291 = vld [vmem:[%s1272 + $0x90] sm:$0xff]
    %v1292 = vld [vmem:[%s1272 + $0x98] sm:$0xff]
    %v1293 = vld [vmem:[%s1272 + $0xa0] sm:$0xff]
    %v1294 = vld [vmem:[%s1272 + $0xa8] sm:$0xff]
    %v1295 = vld [vmem:[%s1272 + $0xb0] sm:$0xff]
    %v1296 = vld [vmem:[%s1272 + $0xb8] sm:$0xff]
    %v1297 = vld [vmem:[%s1272 + $0xc0] sm:$0xff]
    %v1298 = vld [vmem:[%s1272 + $0xc8] sm:$0xff]
    %v1299 = vld [vmem:[%s1272 + $0xd0] sm:$0xff]
    %v1300 = vld [vmem:[%s1272 + $0xd8] sm:$0xff]
    %v1301 = vld [vmem:[%s1272 + $0xe0] sm:$0xff]
    %v1302 = vld [vmem:[%s1272 + $0xe8] sm:$0xff]
    %v1303 = vld [vmem:[%s1272 + $0xf0] sm:$0xff]
    %v1304 = vld [vmem:[%s1272 + $0xf8] sm:$0xff]
    %v1305 = vld [vmem:[%s1272 + $0x100] sm:$0xff]
    %v1306 = vld [vmem:[%s1272 + $0x108] sm:$0xff]
    %v1307 = vld [vmem:[%s1272 + $0x110] sm:$0xff]
    %v1308 = vld [vmem:[%s1272 + $0x118] sm:$0xff]
    %v1309 = vld [vmem:[%s1272 + $0x120] sm:$0xff]
    %v1310 = vld [vmem:[%s1272 + $0x128] sm:$0xff]
    %v1311 = vld [vmem:[%s1272 + $0x130] sm:$0xff]
    %v1312 = vld [vmem:[%s1272 + $0x138] sm:$0xff]
    %v1313 = vld [vmem:[%s1272 + $0x140] sm:$0xff]
    %v1314 = vld [vmem:[%s1272 + $0x148] sm:$0xff]
    %v1315 = vld [vmem:[%s1272 + $0x150] sm:$0xff]
    %v1316 = vld [vmem:[%s1272 + $0x158] sm:$0xff]
    %v1317 = vld [vmem:[%s1272 + $0x160] sm:$0xff]
    %v1318 = vld [vmem:[%s1272 + $0x168] sm:$0xff]
    %v1319 = vld [vmem:[%s1272 + $0x170] sm:$0xff]
    %v1320 = vld [vmem:[%s1272 + $0x178] sm:$0xff]
    %v1321 = vld [vmem:[%s1272 + $0x180] sm:$0xff]
    %v1322 = vld [vmem:[%s1272 + $0x188] sm:$0xff]
    %v1323 = vld [vmem:[%s1272 + $0x190] sm:$0xff]
    %v1324 = vld [vmem:[%s1272 + $0x198] sm:$0xff]
    %v1325 = vld [vmem:[%s1272 + $0x1a0] sm:$0xff]
    %v1326 = vld [vmem:[%s1272 + $0x1a8] sm:$0xff]
    %v1327 = vld [vmem:[%s1272 + $0x1b0] sm:$0xff]
    %v1328 = vld [vmem:[%s1272 + $0x1b8] sm:$0xff]
    %v1329 = vld [vmem:[%s1272 + $0x1c0] sm:$0xff]
    %v1330 = vld [vmem:[%s1272 + $0x1c8] sm:$0xff]
    %v1331 = vld [vmem:[%s1272 + $0x1d0] sm:$0xff]
    %v1332 = vld [vmem:[%s1272 + $0x1d8] sm:$0xff]
    %v1333 = vld [vmem:[%s1272 + $0x1e0] sm:$0xff]
    %v1334 = vld [vmem:[%s1272 + $0x1e8] sm:$0xff]
    %v1335 = vld [vmem:[%s1272 + $0x1f0] sm:$0xff]
    %v1336 = vld [vmem:[%s1272 + $0x1f8] sm:$0xff]
    %1337 = vmatprep.subr.mxu0 0.0
    %1338 = vmatpush1.msra.mxu0 %v1240
    %1339 = vmatprep.subr.mxu0 0.0
    %1340 = vmatpush1.msra.mxu0 %v1241
    %1341 = vmatprep.subr.mxu0 0.0
    %1342 = vmatpush1.msra.mxu0 %v1242
    %1343 = vmatprep.subr.mxu0 0.0
    %1344 = vmatpush1.msra.mxu0 %v1243
    %1345 = vmatprep.subr.mxu0 0.0
    %1346 = vmatpush1.msra.mxu0 %v1244
    %1347 = vmatprep.subr.mxu0 0.0
    %1348 = vmatpush1.msra.mxu0 %v1245
    %1349 = vmatprep.subr.mxu0 0.0
    %1350 = vmatpush1.msra.mxu0 %v1246
    %1351 = vmatprep.subr.mxu0 0.0
    %1352 = vmatpush1.msra.mxu0 %v1247
    %1353 = vmatprep.subr.mxu0 0.0
    %1354 = vmatpush1.msra.mxu0 %v1248
    %1355 = vmatprep.subr.mxu0 0.0
    %1356 = vmatpush1.msra.mxu0 %v1249
    %1357 = vmatprep.subr.mxu0 0.0
    %1358 = vmatpush1.msra.mxu0 %v1250
    %1359 = vmatprep.subr.mxu0 0.0
    %1360 = vmatpush1.msra.mxu0 %v1251
    %1361 = vmatprep.subr.mxu0 0.0
    %1362 = vmatpush1.msra.mxu0 %v1252
    %1363 = vmatprep.subr.mxu0 0.0
    %1364 = vmatpush1.msra.mxu0 %v1253
    %1365 = vmatprep.subr.mxu0 0.0
    %1366 = vmatpush1.msra.mxu0 %v1254
    %1367 = vmatprep.subr.mxu0 0.0
    %1368 = vmatpush1.msra.mxu0 %v1255
    %1369 = vmatprep.subr.mxu0 0.0
    %1370 = vmatpush1.msra.mxu0 %v1256
    %1371 = vmatprep.subr.mxu0 0.0
    %1372 = vmatpush1.msra.mxu0 %v1257
    %1373 = vmatprep.subr.mxu0 0.0
    %1374 = vmatpush1.msra.mxu0 %v1258
    %1375 = vmatprep.subr.mxu0 0.0
    %1376 = vmatpush1.msra.mxu0 %v1259
    %1377 = vmatprep.subr.mxu0 0.0
    %1378 = vmatpush1.msra.mxu0 %v1260
    %1379 = vmatprep.subr.mxu0 0.0
    %1380 = vmatpush1.msra.mxu0 %v1261
    %1381 = vmatprep.subr.mxu0 0.0
    %1382 = vmatpush1.msra.mxu0 %v1262
    %1383 = vmatprep.subr.mxu0 0.0
    %1384 = vmatpush1.msra.mxu0 %v1263
    %1385 = vmatprep.subr.mxu0 0.0
    %1386 = vmatpush1.msra.mxu0 %v1264
    %1387 = vmatprep.subr.mxu0 0.0
    %1388 = vmatpush1.msra.mxu0 %v1265
    %1389 = vmatprep.subr.mxu0 0.0
    %1390 = vmatpush1.msra.mxu0 %v1266
    %1391 = vmatprep.subr.mxu0 0.0
    %1392 = vmatpush1.msra.mxu0 %v1267
    %1393 = vmatprep.subr.mxu0 0.0
    %1394 = vmatpush1.msra.mxu0 %v1268
    %1395 = vmatprep.subr.mxu0 0.0
    %1396 = vmatpush1.msra.mxu0 %v1269
    %1397 = vmatprep.subr.mxu0 0.0
    %1398 = vmatpush1.msra.mxu0 %v1270
    %1399 = vmatprep.subr.mxu0 0.0
    %1400 = vmatpush1.msra.mxu0 %v1271
    %1401 = vmatprep.mubr.f32.mxu0 %v1274
    %1402 = vmatmul.mubr.f32.gmra.mrb[0].mxu0 %v1273
    %v1403 = vpop.f32.mrb[0].mxu0
    %v1404 = vadd.f32 0.0, %v1403
    %v1405 = vpop.f32.mrb[0].mxu0
    %1406 = vmatprep.mubr.f32.mxu0 %v1276
    %1407 = vmatmul.mubr.f32.gmra.mrb[0].mxu0 %v1275
    %v1408 = vpop.f32.mrb[0].mxu0
    %v1409 = vadd.f32 0.0, %v1408
    %v1410 = vpop.f32.mrb[0].mxu0
    %1411 = vmatprep.mubr.f32.mxu0 %v1278
    %1412 = vmatmul.mubr.f32.gmra.mrb[0].mxu0 %v1277
    %v1413 = vpop.f32.mrb[0].mxu0
    %v1414 = vadd.f32 0.0, %v1413
    %v1415 = vpop.f32.mrb[0].mxu0
    %1416 = vmatprep.mubr.f32.mxu0 %v1280
    %1417 = vmatmul.mubr.f32.gmra.mrb[0].mxu0 %v1279
    %v1418 = vpop.f32.mrb[0].mxu0
    %v1419 = vadd.f32 0.0, %v1418
    %v1420 = vpop.f32.mrb[0].mxu0
    %1421 = vmatprep.mubr.f32.mxu0 %v1282
    %1422 = vmatmul.mubr.f32.gmra.mrb[0].mxu0 %v1281
    %v1423 = vpop.f32.mrb[0].mxu0
    %v1424 = vadd.f32 0.0, %v1423
    %v1425 = vpop.f32.mrb[0].mxu0
    %1426 = vmatprep.mubr.f32.mxu0 %v1284
    %1427 = vmatmul.mubr.f32.gmra.mrb[0].mxu0 %v1283
    %v1428 = vpop.f32.mrb[0].mxu0
    %v1429 = vadd.f32 0.0, %v1428
    %v1430 = vpop.f32.mrb[0].mxu0
    %1431 = vmatprep.mubr.f32.mxu0 %v1286
    %1432 = vmatmul.mubr.f32.gmra.mrb[0].mxu0 %v1285
    %v1433 = vpop.f32.mrb[0].mxu0
    %v1434 = vadd.f32 0.0, %v1433
    %v1435 = vpop.f32.mrb[0].mxu0
    %1436 = vmatprep.mubr.f32.mxu0 %v1288
    %1437 = vmatmul.mubr.f32.gmra.mrb[0].mxu0 %v1287
    %v1438 = vpop.f32.mrb[0].mxu0
    %v1439 = vadd.f32 0.0, %v1438
    %v1440 = vpop.f32.mrb[0].mxu0
    %1441 = vmatprep.mubr.f32.mxu0 %v1290
    %1442 = vmatmul.mubr.f32.gmra.mrb[0].mxu0 %v1289
    %v1443 = vpop.f32.mrb[0].mxu0
    %v1444 = vadd.f32 0.0, %v1443
    %v1445 = vpop.f32.mrb[0].mxu0
    %1446 = vmatprep.mubr.f32.mxu0 %v1292
    %1447 = vmatmul.mubr.f32.gmra.mrb[0].mxu0 %v1291
    %v1448 = vpop.f32.mrb[0].mxu0
    %v1449 = vadd.f32 0.0, %v1448
    %v1450 = vpop.f32.mrb[0].mxu0
    %1451 = vmatprep.mubr.f32.mxu0 %v1294
    %1452 = vmatmul.mubr.f32.gmra.mrb[0].mxu0 %v1293
    %v1453 = vpop.f32.mrb[0].mxu0
    %v1454 = vadd.f32 0.0, %v1453
    %v1455 = vpop.f32.mrb[0].mxu0
    %1456 = vmatprep.mubr.f32.mxu0 %v1296
    %1457 = vmatmul.mubr.f32.gmra.mrb[0].mxu0 %v1295
    %v1458 = vpop.f32.mrb[0].mxu0
    %v1459 = vadd.f32 0.0, %v1458
    %v1460 = vpop.f32.mrb[0].mxu0
    %1461 = vmatprep.mubr.f32.mxu0 %v1298
    %1462 = vmatmul.mubr.f32.gmra.mrb[0].mxu0 %v1297
    %v1463 = vpop.f32.mrb[0].mxu0
    %v1464 = vadd.f32 0.0, %v1463
    %v1465 = vpop.f32.mrb[0].mxu0
    %1466 = vmatprep.mubr.f32.mxu0 %v1300
    %1467 = vmatmul.mubr.f32.gmra.mrb[0].mxu0 %v1299
    %v1468 = vpop.f32.mrb[0].mxu0
    %v1469 = vadd.f32 0.0, %v1468
    %v1470 = vpop.f32.mrb[0].mxu0
    %1471 = vmatprep.mubr.f32.mxu0 %v1302
    %1472 = vmatmul.mubr.f32.gmra.mrb[0].mxu0 %v1301
    %v1473 = vpop.f32.mrb[0].mxu0
    %v1474 = vadd.f32 0.0, %v1473
    %v1475 = vpop.f32.mrb[0].mxu0
    %1476 = vmatprep.mubr.f32.mxu0 %v1304
    %1477 = vmatmul.mubr.f32.gmra.mrb[0].mxu0 %v1303
    %v1478 = vpop.f32.mrb[0].mxu0
    %v1479 = vadd.f32 0.0, %v1478
    %v1480 = vpop.f32.mrb[0].mxu0
    %1481 = vmatprep.mubr.f32.mxu0 %v1306
    %1482 = vmatmul.mubr.f32.gmra.mrb[0].mxu0 %v1305
    %v1483 = vpop.f32.mrb[0].mxu0
    %v1484 = vadd.f32 0.0, %v1483
    %v1485 = vpop.f32.mrb[0].mxu0
    %1486 = vmatprep.mubr.f32.mxu0 %v1308
    %1487 = vmatmul.mubr.f32.gmra.mrb[0].mxu0 %v1307
    %v1488 = vpop.f32.mrb[0].mxu0
    %v1489 = vadd.f32 0.0, %v1488
    %v1490 = vpop.f32.mrb[0].mxu0
    %1491 = vmatprep.mubr.f32.mxu0 %v1310
    %1492 = vmatmul.mubr.f32.gmra.mrb[0].mxu0 %v1309
    %v1493 = vpop.f32.mrb[0].mxu0
    %v1494 = vadd.f32 0.0, %v1493
    %v1495 = vpop.f32.mrb[0].mxu0
    %1496 = vmatprep.mubr.f32.mxu0 %v1312
    %1497 = vmatmul.mubr.f32.gmra.mrb[0].mxu0 %v1311
    %v1498 = vpop.f32.mrb[0].mxu0
    %v1499 = vadd.f32 0.0, %v1498
    %v1500 = vpop.f32.mrb[0].mxu0
    %1501 = vmatprep.mubr.f32.mxu0 %v1314
    %1502 = vmatmul.mubr.f32.gmra.mrb[0].mxu0 %v1313
    %v1503 = vpop.f32.mrb[0].mxu0
    %v1504 = vadd.f32 0.0, %v1503
    %v1505 = vpop.f32.mrb[0].mxu0
    %1506 = vmatprep.mubr.f32.mxu0 %v1316
    %1507 = vmatmul.mubr.f32.gmra.mrb[0].mxu0 %v1315
    %v1508 = vpop.f32.mrb[0].mxu0
    %v1509 = vadd.f32 0.0, %v1508
    %v1510 = vpop.f32.mrb[0].mxu0
    %1511 = vmatprep.mubr.f32.mxu0 %v1318
    %1512 = vmatmul.mubr.f32.gmra.mrb[0].mxu0 %v1317
    %v1513 = vpop.f32.mrb[0].mxu0
    %v1514 = vadd.f32 0.0, %v1513
    %v1515 = vpop.f32.mrb[0].mxu0
    %1516 = vmatprep.mubr.f32.mxu0 %v1320
    %1517 = vmatmul.mubr.f32.gmra.mrb[0].mxu0 %v1319
    %v1518 = vpop.f32.mrb[0].mxu0
    %v1519 = vadd.f32 0.0, %v1518
    %v1520 = vpop.f32.mrb[0].mxu0
    %1521 = vmatprep.mubr.f32.mxu0 %v1322
    %1522 = vmatmul.mubr.f32.gmra.mrb[0].mxu0 %v1321
    %v1523 = vpop.f32.mrb[0].mxu0
    %v1524 = vadd.f32 0.0, %v1523
    %v1525 = vpop.f32.mrb[0].mxu0
    %1526 = vmatprep.mubr.f32.mxu0 %v1324
    %1527 = vmatmul.mubr.f32.gmra.mrb[0].mxu0 %v1323
    %v1528 = vpop.f32.mrb[0].mxu0
    %v1529 = vadd.f32 0.0, %v1528
    %v1530 = vpop.f32.mrb[0].mxu0
    %1531 = vmatprep.mubr.f32.mxu0 %v1326
    %1532 = vmatmul.mubr.f32.gmra.mrb[0].mxu0 %v1325
    %v1533 = vpop.f32.mrb[0].mxu0
    %v1534 = vadd.f32 0.0, %v1533
    %v1535 = vpop.f32.mrb[0].mxu0
    %1536 = vmatprep.mubr.f32.mxu0 %v1328
    %1537 = vmatmul.mubr.f32.gmra.mrb[0].mxu0 %v1327
    %v1538 = vpop.f32.mrb[0].mxu0
    %v1539 = vadd.f32 0.0, %v1538
    %v1540 = vpop.f32.mrb[0].mxu0
    %1541 = vmatprep.mubr.f32.mxu0 %v1330
    %1542 = vmatmul.mubr.f32.gmra.mrb[0].mxu0 %v1329
    %v1543 = vpop.f32.mrb[0].mxu0
    %v1544 = vadd.f32 0.0, %v1543
    %v1545 = vpop.f32.mrb[0].mxu0
    %1546 = vmatprep.mubr.f32.mxu0 %v1332
    %1547 = vmatmul.mubr.f32.gmra.mrb[0].mxu0 %v1331
    %v1548 = vpop.f32.mrb[0].mxu0
    %v1549 = vadd.f32 0.0, %v1548
    %v1550 = vpop.f32.mrb[0].mxu0
    %1551 = vmatprep.mubr.f32.mxu0 %v1334
    %1552 = vmatmul.mubr.f32.gmra.mrb[0].mxu0 %v1333
    %v1553 = vpop.f32.mrb[0].mxu0
    %v1554 = vadd.f32 0.0, %v1553
    %v1555 = vpop.f32.mrb[0].mxu0
    %1556 = vmatprep.mubr.f32.mxu0 %v1336
    %1557 = vmatmul.mubr.f32.gmra.mrb[0].mxu0 %v1335
    %v1558 = vpop.f32.mrb[0].mxu0
    %v1559 = vadd.f32 0.0, %v1558
    %v1560 = vpop.f32.mrb[0].mxu0
    %1561 = vdwg.mxu0
    %v1562 = vmax.f32 %v1404, 0.0
    %v1563 = vmax.f32 %v1409, 0.0
    %v1564 = vmax.f32 %v1414, 0.0
    %v1565 = vmax.f32 %v1419, 0.0
    %v1566 = vmax.f32 %v1424, 0.0
    %v1567 = vmax.f32 %v1429, 0.0
    %v1568 = vmax.f32 %v1434, 0.0
    %v1569 = vmax.f32 %v1439, 0.0
    %v1570 = vmax.f32 %v1444, 0.0
    %v1571 = vmax.f32 %v1449, 0.0
    %v1572 = vmax.f32 %v1454, 0.0
    %v1573 = vmax.f32 %v1459, 0.0
    %v1574 = vmax.f32 %v1464, 0.0
    %v1575 = vmax.f32 %v1469, 0.0
    %v1576 = vmax.f32 %v1474, 0.0
    %v1577 = vmax.f32 %v1479, 0.0
    %v1578 = vmax.f32 %v1484, 0.0
    %v1579 = vmax.f32 %v1489, 0.0
    %v1580 = vmax.f32 %v1494, 0.0
    %v1581 = vmax.f32 %v1499, 0.0
    %v1582 = vmax.f32 %v1504, 0.0
    %v1583 = vmax.f32 %v1509, 0.0
    %v1584 = vmax.f32 %v1514, 0.0
    %v1585 = vmax.f32 %v1519, 0.0
    %v1586 = vmax.f32 %v1524, 0.0
    %v1587 = vmax.f32 %v1529, 0.0
    %v1588 = vmax.f32 %v1534, 0.0
    %v1589 = vmax.f32 %v1539, 0.0
    %v1590 = vmax.f32 %v1544, 0.0
    %v1591 = vmax.f32 %v1549, 0.0
    %v1592 = vmax.f32 %v1554, 0.0
    %v1593 = vmax.f32 %v1559, 0.0
    %s1594 = scalar_lea.vmem [#allocation2], 2048
    %v1595 = vld [vmem:[%s1594] sm:$0xff]
    %v1596 = vld [vmem:[%s1594 + $0x8] sm:$0xff]
    %v1597 = vld [vmem:[%s1594 + $0x10] sm:$0xff]
    %v1598 = vld [vmem:[%s1594 + $0x18] sm:$0xff]
    %v1599 = vld [vmem:[%s1594 + $0x20] sm:$0xff]
    %v1600 = vld [vmem:[%s1594 + $0x28] sm:$0xff]
    %v1601 = vld [vmem:[%s1594 + $0x30] sm:$0xff]
    %v1602 = vld [vmem:[%s1594 + $0x38] sm:$0xff]
    %v1603 = vld [vmem:[%s1594 + $0x40] sm:$0xff]
    %v1604 = vld [vmem:[%s1594 + $0x48] sm:$0xff]
    %v1605 = vld [vmem:[%s1594 + $0x50] sm:$0xff]
    %v1606 = vld [vmem:[%s1594 + $0x58] sm:$0xff]
    %v1607 = vld [vmem:[%s1594 + $0x60] sm:$0xff]
    %v1608 = vld [vmem:[%s1594 + $0x68] sm:$0xff]
    %v1609 = vld [vmem:[%s1594 + $0x70] sm:$0xff]
    %v1610 = vld [vmem:[%s1594 + $0x78] sm:$0xff]
    %v1611 = vld [vmem:[%s1594 + $0x80] sm:$0xff]
    %v1612 = vld [vmem:[%s1594 + $0x88] sm:$0xff]
    %v1613 = vld [vmem:[%s1594 + $0x90] sm:$0xff]
    %v1614 = vld [vmem:[%s1594 + $0x98] sm:$0xff]
    %v1615 = vld [vmem:[%s1594 + $0xa0] sm:$0xff]
    %v1616 = vld [vmem:[%s1594 + $0xa8] sm:$0xff]
    %v1617 = vld [vmem:[%s1594 + $0xb0] sm:$0xff]
    %v1618 = vld [vmem:[%s1594 + $0xb8] sm:$0xff]
    %v1619 = vld [vmem:[%s1594 + $0xc0] sm:$0xff]
    %v1620 = vld [vmem:[%s1594 + $0xc8] sm:$0xff]
    %v1621 = vld [vmem:[%s1594 + $0xd0] sm:$0xff]
    %v1622 = vld [vmem:[%s1594 + $0xd8] sm:$0xff]
    %v1623 = vld [vmem:[%s1594 + $0xe0] sm:$0xff]
    %v1624 = vld [vmem:[%s1594 + $0xe8] sm:$0xff]
    %v1625 = vld [vmem:[%s1594 + $0xf0] sm:$0xff]
    %v1626 = vld [vmem:[%s1594 + $0xf8] sm:$0xff]
    %v1627 = vld [vmem:[%s1594 + $0x100] sm:$0xff]
    %v1628 = vld [vmem:[%s1594 + $0x108] sm:$0xff]
    %v1629 = vld [vmem:[%s1594 + $0x110] sm:$0xff]
    %v1630 = vld [vmem:[%s1594 + $0x118] sm:$0xff]
    %v1631 = vld [vmem:[%s1594 + $0x120] sm:$0xff]
    %v1632 = vld [vmem:[%s1594 + $0x128] sm:$0xff]
    %v1633 = vld [vmem:[%s1594 + $0x130] sm:$0xff]
    %v1634 = vld [vmem:[%s1594 + $0x138] sm:$0xff]
    %v1635 = vld [vmem:[%s1594 + $0x140] sm:$0xff]
    %v1636 = vld [vmem:[%s1594 + $0x148] sm:$0xff]
    %v1637 = vld [vmem:[%s1594 + $0x150] sm:$0xff]
    %v1638 = vld [vmem:[%s1594 + $0x158] sm:$0xff]
    %v1639 = vld [vmem:[%s1594 + $0x160] sm:$0xff]
    %v1640 = vld [vmem:[%s1594 + $0x168] sm:$0xff]
    %v1641 = vld [vmem:[%s1594 + $0x170] sm:$0xff]
    %v1642 = vld [vmem:[%s1594 + $0x178] sm:$0xff]
    %v1643 = vld [vmem:[%s1594 + $0x180] sm:$0xff]
    %v1644 = vld [vmem:[%s1594 + $0x188] sm:$0xff]
    %v1645 = vld [vmem:[%s1594 + $0x190] sm:$0xff]
    %v1646 = vld [vmem:[%s1594 + $0x198] sm:$0xff]
    %v1647 = vld [vmem:[%s1594 + $0x1a0] sm:$0xff]
    %v1648 = vld [vmem:[%s1594 + $0x1a8] sm:$0xff]
    %v1649 = vld [vmem:[%s1594 + $0x1b0] sm:$0xff]
    %v1650 = vld [vmem:[%s1594 + $0x1b8] sm:$0xff]
    %v1651 = vld [vmem:[%s1594 + $0x1c0] sm:$0xff]
    %v1652 = vld [vmem:[%s1594 + $0x1c8] sm:$0xff]
    %v1653 = vld [vmem:[%s1594 + $0x1d0] sm:$0xff]
    %v1654 = vld [vmem:[%s1594 + $0x1d8] sm:$0xff]
    %v1655 = vld [vmem:[%s1594 + $0x1e0] sm:$0xff]
    %v1656 = vld [vmem:[%s1594 + $0x1e8] sm:$0xff]
    %v1657 = vld [vmem:[%s1594 + $0x1f0] sm:$0xff]
    %v1658 = vld [vmem:[%s1594 + $0x1f8] sm:$0xff]
    %1659 = vmatprep.subr.mxu0 0.0
    %1660 = vmatpush1.msra.mxu0 %v1562
    %1661 = vmatprep.subr.mxu0 0.0
    %1662 = vmatpush1.msra.mxu0 %v1563
    %1663 = vmatprep.subr.mxu0 0.0
    %1664 = vmatpush1.msra.mxu0 %v1564
    %1665 = vmatprep.subr.mxu0 0.0
    %1666 = vmatpush1.msra.mxu0 %v1565
    %1667 = vmatprep.subr.mxu0 0.0
    %1668 = vmatpush1.msra.mxu0 %v1566
    %1669 = vmatprep.subr.mxu0 0.0
    %1670 = vmatpush1.msra.mxu0 %v1567
    %1671 = vmatprep.subr.mxu0 0.0
    %1672 = vmatpush1.msra.mxu0 %v1568
    %1673 = vmatprep.subr.mxu0 0.0
    %1674 = vmatpush1.msra.mxu0 %v1569
    %1675 = vmatprep.subr.mxu0 0.0
    %1676 = vmatpush1.msra.mxu0 %v1570
    %1677 = vmatprep.subr.mxu0 0.0
    %1678 = vmatpush1.msra.mxu0 %v1571
    %1679 = vmatprep.subr.mxu0 0.0
    %1680 = vmatpush1.msra.mxu0 %v1572
    %1681 = vmatprep.subr.mxu0 0.0
    %1682 = vmatpush1.msra.mxu0 %v1573
    %1683 = vmatprep.subr.mxu0 0.0
    %1684 = vmatpush1.msra.mxu0 %v1574
    %1685 = vmatprep.subr.mxu0 0.0
    %1686 = vmatpush1.msra.mxu0 %v1575
    %1687 = vmatprep.subr.mxu0 0.0
    %1688 = vmatpush1.msra.mxu0 %v1576
    %1689 = vmatprep.subr.mxu0 0.0
    %1690 = vmatpush1.msra.mxu0 %v1577
    %1691 = vmatprep.subr.mxu0 0.0
    %1692 = vmatpush1.msra.mxu0 %v1578
    %1693 = vmatprep.subr.mxu0 0.0
    %1694 = vmatpush1.msra.mxu0 %v1579
    %1695 = vmatprep.subr.mxu0 0.0
    %1696 = vmatpush1.msra.mxu0 %v1580
    %1697 = vmatprep.subr.mxu0 0.0
    %1698 = vmatpush1.msra.mxu0 %v1581
    %1699 = vmatprep.subr.mxu0 0.0
    %1700 = vmatpush1.msra.mxu0 %v1582
    %1701 = vmatprep.subr.mxu0 0.0
    %1702 = vmatpush1.msra.mxu0 %v1583
    %1703 = vmatprep.subr.mxu0 0.0
    %1704 = vmatpush1.msra.mxu0 %v1584
    %1705 = vmatprep.subr.mxu0 0.0
    %1706 = vmatpush1.msra.mxu0 %v1585
    %1707 = vmatprep.subr.mxu0 0.0
    %1708 = vmatpush1.msra.mxu0 %v1586
    %1709 = vmatprep.subr.mxu0 0.0
    %1710 = vmatpush1.msra.mxu0 %v1587
    %1711 = vmatprep.subr.mxu0 0.0
    %1712 = vmatpush1.msra.mxu0 %v1588
    %1713 = vmatprep.subr.mxu0 0.0
    %1714 = vmatpush1.msra.mxu0 %v1589
    %1715 = vmatprep.subr.mxu0 0.0
    %1716 = vmatpush1.msra.mxu0 %v1590
    %1717 = vmatprep.subr.mxu0 0.0
    %1718 = vmatpush1.msra.mxu0 %v1591
    %1719 = vmatprep.subr.mxu0 0.0
    %1720 = vmatpush1.msra.mxu0 %v1592
    %1721 = vmatprep.subr.mxu0 0.0
    %1722 = vmatpush1.msra.mxu0 %v1593
    %1723 = vmatprep.mubr.f32.mxu0 %v1596
    %1724 = vmatmul.mubr.f32.gmra.mrb[0].mxu0 %v1595
    %v1725 = vpop.f32.mrb[0].mxu0
    %v1726 = vadd.f32 0.0, %v1725
    %v1727 = vpop.f32.mrb[0].mxu0
    %1728 = vmatprep.mubr.f32.mxu0 %v1598
    %1729 = vmatmul.mubr.f32.gmra.mrb[0].mxu0 %v1597
    %v1730 = vpop.f32.mrb[0].mxu0
    %v1731 = vadd.f32 0.0, %v1730
    %v1732 = vpop.f32.mrb[0].mxu0
    %1733 = vmatprep.mubr.f32.mxu0 %v1600
    %1734 = vmatmul.mubr.f32.gmra.mrb[0].mxu0 %v1599
    %v1735 = vpop.f32.mrb[0].mxu0
    %v1736 = vadd.f32 0.0, %v1735
    %v1737 = vpop.f32.mrb[0].mxu0
    %1738 = vmatprep.mubr.f32.mxu0 %v1602
    %1739 = vmatmul.mubr.f32.gmra.mrb[0].mxu0 %v1601
    %v1740 = vpop.f32.mrb[0].mxu0
    %v1741 = vadd.f32 0.0, %v1740
    %v1742 = vpop.f32.mrb[0].mxu0
    %1743 = vmatprep.mubr.f32.mxu0 %v1604
    %1744 = vmatmul.mubr.f32.gmra.mrb[0].mxu0 %v1603
    %v1745 = vpop.f32.mrb[0].mxu0
    %v1746 = vadd.f32 0.0, %v1745
    %v1747 = vpop.f32.mrb[0].mxu0
    %1748 = vmatprep.mubr.f32.mxu0 %v1606
    %1749 = vmatmul.mubr.f32.gmra.mrb[0].mxu0 %v1605
    %v1750 = vpop.f32.mrb[0].mxu0
    %v1751 = vadd.f32 0.0, %v1750
    %v1752 = vpop.f32.mrb[0].mxu0
    %1753 = vmatprep.mubr.f32.mxu0 %v1608
    %1754 = vmatmul.mubr.f32.gmra.mrb[0].mxu0 %v1607
    %v1755 = vpop.f32.mrb[0].mxu0
    %v1756 = vadd.f32 0.0, %v1755
    %v1757 = vpop.f32.mrb[0].mxu0
    %1758 = vmatprep.mubr.f32.mxu0 %v1610
    %1759 = vmatmul.mubr.f32.gmra.mrb[0].mxu0 %v1609
    %v1760 = vpop.f32.mrb[0].mxu0
    %v1761 = vadd.f32 0.0, %v1760
    %v1762 = vpop.f32.mrb[0].mxu0
    %1763 = vmatprep.mubr.f32.mxu0 %v1612
    %1764 = vmatmul.mubr.f32.gmra.mrb[0].mxu0 %v1611
    %v1765 = vpop.f32.mrb[0].mxu0
    %v1766 = vadd.f32 0.0, %v1765
    %v1767 = vpop.f32.mrb[0].mxu0
    %1768 = vmatprep.mubr.f32.mxu0 %v1614
    %1769 = vmatmul.mubr.f32.gmra.mrb[0].mxu0 %v1613
    %v1770 = vpop.f32.mrb[0].mxu0
    %v1771 = vadd.f32 0.0, %v1770
    %v1772 = vpop.f32.mrb[0].mxu0
    %1773 = vmatprep.mubr.f32.mxu0 %v1616
    %1774 = vmatmul.mubr.f32.gmra.mrb[0].mxu0 %v1615
    %v1775 = vpop.f32.mrb[0].mxu0
    %v1776 = vadd.f32 0.0, %v1775
    %v1777 = vpop.f32.mrb[0].mxu0
    %1778 = vmatprep.mubr.f32.mxu0 %v1618
    %1779 = vmatmul.mubr.f32.gmra.mrb[0].mxu0 %v1617
    %v1780 = vpop.f32.mrb[0].mxu0
    %v1781 = vadd.f32 0.0, %v1780
    %v1782 = vpop.f32.mrb[0].mxu0
    %1783 = vmatprep.mubr.f32.mxu0 %v1620
    %1784 = vmatmul.mubr.f32.gmra.mrb[0].mxu0 %v1619
    %v1785 = vpop.f32.mrb[0].mxu0
    %v1786 = vadd.f32 0.0, %v1785
    %v1787 = vpop.f32.mrb[0].mxu0
    %1788 = vmatprep.mubr.f32.mxu0 %v1622
    %1789 = vmatmul.mubr.f32.gmra.mrb[0].mxu0 %v1621
    %v1790 = vpop.f32.mrb[0].mxu0
    %v1791 = vadd.f32 0.0, %v1790
    %v1792 = vpop.f32.mrb[0].mxu0
    %1793 = vmatprep.mubr.f32.mxu0 %v1624
    %1794 = vmatmul.mubr.f32.gmra.mrb[0].mxu0 %v1623
    %v1795 = vpop.f32.mrb[0].mxu0
    %v1796 = vadd.f32 0.0, %v1795
    %v1797 = vpop.f32.mrb[0].mxu0
    %1798 = vmatprep.mubr.f32.mxu0 %v1626
    %1799 = vmatmul.mubr.f32.gmra.mrb[0].mxu0 %v1625
    %v1800 = vpop.f32.mrb[0].mxu0
    %v1801 = vadd.f32 0.0, %v1800
    %v1802 = vpop.f32.mrb[0].mxu0
    %1803 = vmatprep.mubr.f32.mxu0 %v1628
    %1804 = vmatmul.mubr.f32.gmra.mrb[0].mxu0 %v1627
    %v1805 = vpop.f32.mrb[0].mxu0
    %v1806 = vadd.f32 0.0, %v1805
    %v1807 = vpop.f32.mrb[0].mxu0
    %1808 = vmatprep.mubr.f32.mxu0 %v1630
    %1809 = vmatmul.mubr.f32.gmra.mrb[0].mxu0 %v1629
    %v1810 = vpop.f32.mrb[0].mxu0
    %v1811 = vadd.f32 0.0, %v1810
    %v1812 = vpop.f32.mrb[0].mxu0
    %1813 = vmatprep.mubr.f32.mxu0 %v1632
    %1814 = vmatmul.mubr.f32.gmra.mrb[0].mxu0 %v1631
    %v1815 = vpop.f32.mrb[0].mxu0
    %v1816 = vadd.f32 0.0, %v1815
    %v1817 = vpop.f32.mrb[0].mxu0
    %1818 = vmatprep.mubr.f32.mxu0 %v1634
    %1819 = vmatmul.mubr.f32.gmra.mrb[0].mxu0 %v1633
    %v1820 = vpop.f32.mrb[0].mxu0
    %v1821 = vadd.f32 0.0, %v1820
    %v1822 = vpop.f32.mrb[0].mxu0
    %1823 = vmatprep.mubr.f32.mxu0 %v1636
    %1824 = vmatmul.mubr.f32.gmra.mrb[0].mxu0 %v1635
    %v1825 = vpop.f32.mrb[0].mxu0
    %v1826 = vadd.f32 0.0, %v1825
    %v1827 = vpop.f32.mrb[0].mxu0
    %1828 = vmatprep.mubr.f32.mxu0 %v1638
    %1829 = vmatmul.mubr.f32.gmra.mrb[0].mxu0 %v1637
    %v1830 = vpop.f32.mrb[0].mxu0
    %v1831 = vadd.f32 0.0, %v1830
    %v1832 = vpop.f32.mrb[0].mxu0
    %1833 = vmatprep.mubr.f32.mxu0 %v1640
    %1834 = vmatmul.mubr.f32.gmra.mrb[0].mxu0 %v1639
    %v1835 = vpop.f32.mrb[0].mxu0
    %v1836 = vadd.f32 0.0, %v1835
    %v1837 = vpop.f32.mrb[0].mxu0
    %1838 = vmatprep.mubr.f32.mxu0 %v1642
    %1839 = vmatmul.mubr.f32.gmra.mrb[0].mxu0 %v1641
    %v1840 = vpop.f32.mrb[0].mxu0
    %v1841 = vadd.f32 0.0, %v1840
    %v1842 = vpop.f32.mrb[0].mxu0
    %1843 = vmatprep.mubr.f32.mxu0 %v1644
    %1844 = vmatmul.mubr.f32.gmra.mrb[0].mxu0 %v1643
    %v1845 = vpop.f32.mrb[0].mxu0
    %v1846 = vadd.f32 0.0, %v1845
    %v1847 = vpop.f32.mrb[0].mxu0
    %1848 = vmatprep.mubr.f32.mxu0 %v1646
    %1849 = vmatmul.mubr.f32.gmra.mrb[0].mxu0 %v1645
    %v1850 = vpop.f32.mrb[0].mxu0
    %v1851 = vadd.f32 0.0, %v1850
    %v1852 = vpop.f32.mrb[0].mxu0
    %1853 = vmatprep.mubr.f32.mxu0 %v1648
    %1854 = vmatmul.mubr.f32.gmra.mrb[0].mxu0 %v1647
    %v1855 = vpop.f32.mrb[0].mxu0
    %v1856 = vadd.f32 0.0, %v1855
    %v1857 = vpop.f32.mrb[0].mxu0
    %1858 = vmatprep.mubr.f32.mxu0 %v1650
    %1859 = vmatmul.mubr.f32.gmra.mrb[0].mxu0 %v1649
    %v1860 = vpop.f32.mrb[0].mxu0
    %v1861 = vadd.f32 0.0, %v1860
    %v1862 = vpop.f32.mrb[0].mxu0
    %1863 = vmatprep.mubr.f32.mxu0 %v1652
    %1864 = vmatmul.mubr.f32.gmra.mrb[0].mxu0 %v1651
    %v1865 = vpop.f32.mrb[0].mxu0
    %v1866 = vadd.f32 0.0, %v1865
    %v1867 = vpop.f32.mrb[0].mxu0
    %1868 = vmatprep.mubr.f32.mxu0 %v1654
    %1869 = vmatmul.mubr.f32.gmra.mrb[0].mxu0 %v1653
    %v1870 = vpop.f32.mrb[0].mxu0
    %v1871 = vadd.f32 0.0, %v1870
    %v1872 = vpop.f32.mrb[0].mxu0
    %1873 = vmatprep.mubr.f32.mxu0 %v1656
    %1874 = vmatmul.mubr.f32.gmra.mrb[0].mxu0 %v1655
    %v1875 = vpop.f32.mrb[0].mxu0
    %v1876 = vadd.f32 0.0, %v1875
    %v1877 = vpop.f32.mrb[0].mxu0
    %1878 = vmatprep.mubr.f32.mxu0 %v1658
    %1879 = vmatmul.mubr.f32.gmra.mrb[0].mxu0 %v1657
    %v1880 = vpop.f32.mrb[0].mxu0
    %v1881 = vadd.f32 0.0, %v1880
    %v1882 = vpop.f32.mrb[0].mxu0
    %1883 = vdwg.mxu0
    %v1884 = vmax.f32 %v1726, 0.0
    %v1885 = vmax.f32 %v1731, 0.0
    %v1886 = vmax.f32 %v1736, 0.0
    %v1887 = vmax.f32 %v1741, 0.0
    %v1888 = vmax.f32 %v1746, 0.0
    %v1889 = vmax.f32 %v1751, 0.0
    %v1890 = vmax.f32 %v1756, 0.0
    %v1891 = vmax.f32 %v1761, 0.0
    %v1892 = vmax.f32 %v1766, 0.0
    %v1893 = vmax.f32 %v1771, 0.0
    %v1894 = vmax.f32 %v1776, 0.0
    %v1895 = vmax.f32 %v1781, 0.0
    %v1896 = vmax.f32 %v1786, 0.0
    %v1897 = vmax.f32 %v1791, 0.0
    %v1898 = vmax.f32 %v1796, 0.0
    %v1899 = vmax.f32 %v1801, 0.0
    %v1900 = vmax.f32 %v1806, 0.0
    %v1901 = vmax.f32 %v1811, 0.0
    %v1902 = vmax.f32 %v1816, 0.0
    %v1903 = vmax.f32 %v1821, 0.0
    %v1904 = vmax.f32 %v1826, 0.0
    %v1905 = vmax.f32 %v1831, 0.0
    %v1906 = vmax.f32 %v1836, 0.0
    %v1907 = vmax.f32 %v1841, 0.0
    %v1908 = vmax.f32 %v1846, 0.0
    %v1909 = vmax.f32 %v1851, 0.0
    %v1910 = vmax.f32 %v1856, 0.0
    %v1911 = vmax.f32 %v1861, 0.0
    %v1912 = vmax.f32 %v1866, 0.0
    %v1913 = vmax.f32 %v1871, 0.0
    %v1914 = vmax.f32 %v1876, 0.0
    %v1915 = vmax.f32 %v1881, 0.0
    %1916 = vxpose.xlu0.b32.start [1/16] %v1884, 128
    %1917 = vxpose.xlu0.b32.cont [2/16] %v1885, 128
    %1918 = vxpose.xlu0.b32.cont [3/16] %v1886, 128
    %1919 = vxpose.xlu0.b32.cont [4/16] %v1887, 128
    %1920 = vxpose.xlu0.b32.cont [5/16] 0.0, 128
    %1921 = vxpose.xlu0.b32.cont [6/16] 0.0, 128
    %1922 = vxpose.xlu0.b32.cont [7/16] 0.0, 128
    %1923 = vxpose.xlu0.b32.cont [8/16] 0.0, 128
    %1924 = vxpose.xlu0.b32.cont [9/16] 0.0, 128
    %1925 = vxpose.xlu0.b32.cont [10/16] 0.0, 128
    %1926 = vxpose.xlu0.b32.cont [11/16] 0.0, 128
    %1927 = vxpose.xlu0.b32.cont [12/16] 0.0, 128
    %1928 = vxpose.xlu0.b32.cont [13/16] 0.0, 128
    %1929 = vxpose.xlu0.b32.cont [14/16] 0.0, 128
    %1930 = vxpose.xlu0.b32.cont [15/16] 0.0, 128
    %1931 = vxpose.xlu0.b32.end [16/16] 0.0, 128
    %v1932 = vpop.trf.xlu0
    %v1933 = vpop.trf.xlu0
    %v1934 = vpop.trf.xlu0
    %v1935 = vpop.trf.xlu0
    %v1936 = vpop.trf.xlu0
    %v1937 = vpop.trf.xlu0
    %v1938 = vpop.trf.xlu0
    %v1939 = vpop.trf.xlu0
    %v1940 = vpop.trf.xlu0
    %v1941 = vpop.trf.xlu0
    %v1942 = vpop.trf.xlu0
    %v1943 = vpop.trf.xlu0
    %v1944 = vpop.trf.xlu0
    %v1945 = vpop.trf.xlu0
    %v1946 = vpop.trf.xlu0
    %v1947 = vpop.trf.xlu0
    %1948 = vxpose.xlu0.b32.start [1/16] %v1888, 128
    %1949 = vxpose.xlu0.b32.cont [2/16] %v1889, 128
    %1950 = vxpose.xlu0.b32.cont [3/16] %v1890, 128
    %1951 = vxpose.xlu0.b32.cont [4/16] %v1891, 128
    %1952 = vxpose.xlu0.b32.cont [5/16] 0.0, 128
    %1953 = vxpose.xlu0.b32.cont [6/16] 0.0, 128
    %1954 = vxpose.xlu0.b32.cont [7/16] 0.0, 128
    %1955 = vxpose.xlu0.b32.cont [8/16] 0.0, 128
    %1956 = vxpose.xlu0.b32.cont [9/16] 0.0, 128
    %1957 = vxpose.xlu0.b32.cont [10/16] 0.0, 128
    %1958 = vxpose.xlu0.b32.cont [11/16] 0.0, 128
    %1959 = vxpose.xlu0.b32.cont [12/16] 0.0, 128
    %1960 = vxpose.xlu0.b32.cont [13/16] 0.0, 128
    %1961 = vxpose.xlu0.b32.cont [14/16] 0.0, 128
    %1962 = vxpose.xlu0.b32.cont [15/16] 0.0, 128
    %1963 = vxpose.xlu0.b32.end [16/16] 0.0, 128
    %v1964 = vpop.trf.xlu0
    %v1965 = vpop.trf.xlu0
    %v1966 = vpop.trf.xlu0
    %v1967 = vpop.trf.xlu0
    %v1968 = vpop.trf.xlu0
    %v1969 = vpop.trf.xlu0
    %v1970 = vpop.trf.xlu0
    %v1971 = vpop.trf.xlu0
    %v1972 = vpop.trf.xlu0
    %v1973 = vpop.trf.xlu0
    %v1974 = vpop.trf.xlu0
    %v1975 = vpop.trf.xlu0
    %v1976 = vpop.trf.xlu0
    %v1977 = vpop.trf.xlu0
    %v1978 = vpop.trf.xlu0
    %v1979 = vpop.trf.xlu0
    %1980 = vxpose.xlu0.b32.start [1/16] %v1892, 128
    %1981 = vxpose.xlu0.b32.cont [2/16] %v1893, 128
    %1982 = vxpose.xlu0.b32.cont [3/16] %v1894, 128
    %1983 = vxpose.xlu0.b32.cont [4/16] %v1895, 128
    %1984 = vxpose.xlu0.b32.cont [5/16] 0.0, 128
    %1985 = vxpose.xlu0.b32.cont [6/16] 0.0, 128
    %1986 = vxpose.xlu0.b32.cont [7/16] 0.0, 128
    %1987 = vxpose.xlu0.b32.cont [8/16] 0.0, 128
    %1988 = vxpose.xlu0.b32.cont [9/16] 0.0, 128
    %1989 = vxpose.xlu0.b32.cont [10/16] 0.0, 128
    %1990 = vxpose.xlu0.b32.cont [11/16] 0.0, 128
    %1991 = vxpose.xlu0.b32.cont [12/16] 0.0, 128
    %1992 = vxpose.xlu0.b32.cont [13/16] 0.0, 128
    %1993 = vxpose.xlu0.b32.cont [14/16] 0.0, 128
    %1994 = vxpose.xlu0.b32.cont [15/16] 0.0, 128
    %1995 = vxpose.xlu0.b32.end [16/16] 0.0, 128
    %v1996 = vpop.trf.xlu0
    %v1997 = vpop.trf.xlu0
    %v1998 = vpop.trf.xlu0
    %v1999 = vpop.trf.xlu0
    %v2000 = vpop.trf.xlu0
    %v2001 = vpop.trf.xlu0
    %v2002 = vpop.trf.xlu0
    %v2003 = vpop.trf.xlu0
    %v2004 = vpop.trf.xlu0
    %v2005 = vpop.trf.xlu0
    %v2006 = vpop.trf.xlu0
    %v2007 = vpop.trf.xlu0
    %v2008 = vpop.trf.xlu0
    %v2009 = vpop.trf.xlu0
    %v2010 = vpop.trf.xlu0
    %v2011 = vpop.trf.xlu0
    %2012 = vxpose.xlu0.b32.start [1/16] %v1896, 128
    %2013 = vxpose.xlu0.b32.cont [2/16] %v1897, 128
    %2014 = vxpose.xlu0.b32.cont [3/16] %v1898, 128
    %2015 = vxpose.xlu0.b32.cont [4/16] %v1899, 128
    %2016 = vxpose.xlu0.b32.cont [5/16] 0.0, 128
    %2017 = vxpose.xlu0.b32.cont [6/16] 0.0, 128
    %2018 = vxpose.xlu0.b32.cont [7/16] 0.0, 128
    %2019 = vxpose.xlu0.b32.cont [8/16] 0.0, 128
    %2020 = vxpose.xlu0.b32.cont [9/16] 0.0, 128
    %2021 = vxpose.xlu0.b32.cont [10/16] 0.0, 128
    %2022 = vxpose.xlu0.b32.cont [11/16] 0.0, 128
    %2023 = vxpose.xlu0.b32.cont [12/16] 0.0, 128
    %2024 = vxpose.xlu0.b32.cont [13/16] 0.0, 128
    %2025 = vxpose.xlu0.b32.cont [14/16] 0.0, 128
    %2026 = vxpose.xlu0.b32.cont [15/16] 0.0, 128
    %2027 = vxpose.xlu0.b32.end [16/16] 0.0, 128
    %v2028 = vpop.trf.xlu0
    %v2029 = vpop.trf.xlu0
    %v2030 = vpop.trf.xlu0
    %v2031 = vpop.trf.xlu0
    %v2032 = vpop.trf.xlu0
    %v2033 = vpop.trf.xlu0
    %v2034 = vpop.trf.xlu0
    %v2035 = vpop.trf.xlu0
    %v2036 = vpop.trf.xlu0
    %v2037 = vpop.trf.xlu0
    %v2038 = vpop.trf.xlu0
    %v2039 = vpop.trf.xlu0
    %v2040 = vpop.trf.xlu0
    %v2041 = vpop.trf.xlu0
    %v2042 = vpop.trf.xlu0
    %v2043 = vpop.trf.xlu0
    %2044 = vxpose.xlu0.b32.start [1/16] %v1900, 128
    %2045 = vxpose.xlu0.b32.cont [2/16] %v1901, 128
    %2046 = vxpose.xlu0.b32.cont [3/16] %v1902, 128
    %2047 = vxpose.xlu0.b32.cont [4/16] %v1903, 128
    %2048 = vxpose.xlu0.b32.cont [5/16] 0.0, 128
    %2049 = vxpose.xlu0.b32.cont [6/16] 0.0, 128
    %2050 = vxpose.xlu0.b32.cont [7/16] 0.0, 128
    %2051 = vxpose.xlu0.b32.cont [8/16] 0.0, 128
    %2052 = vxpose.xlu0.b32.cont [9/16] 0.0, 128
    %2053 = vxpose.xlu0.b32.cont [10/16] 0.0, 128
    %2054 = vxpose.xlu0.b32.cont [11/16] 0.0, 128
    %2055 = vxpose.xlu0.b32.cont [12/16] 0.0, 128
    %2056 = vxpose.xlu0.b32.cont [13/16] 0.0, 128
    %2057 = vxpose.xlu0.b32.cont [14/16] 0.0, 128
    %2058 = vxpose.xlu0.b32.cont [15/16] 0.0, 128
    %2059 = vxpose.xlu0.b32.end [16/16] 0.0, 128
    %v2060 = vpop.trf.xlu0
    %v2061 = vpop.trf.xlu0
    %v2062 = vpop.trf.xlu0
    %v2063 = vpop.trf.xlu0
    %v2064 = vpop.trf.xlu0
    %v2065 = vpop.trf.xlu0
    %v2066 = vpop.trf.xlu0
    %v2067 = vpop.trf.xlu0
    %v2068 = vpop.trf.xlu0
    %v2069 = vpop.trf.xlu0
    %v2070 = vpop.trf.xlu0
    %v2071 = vpop.trf.xlu0
    %v2072 = vpop.trf.xlu0
    %v2073 = vpop.trf.xlu0
    %v2074 = vpop.trf.xlu0
    %v2075 = vpop.trf.xlu0
    %2076 = vxpose.xlu0.b32.start [1/16] %v1904, 128
    %2077 = vxpose.xlu0.b32.cont [2/16] %v1905, 128
    %2078 = vxpose.xlu0.b32.cont [3/16] %v1906, 128
    %2079 = vxpose.xlu0.b32.cont [4/16] %v1907, 128
    %2080 = vxpose.xlu0.b32.cont [5/16] 0.0, 128
    %2081 = vxpose.xlu0.b32.cont [6/16] 0.0, 128
    %2082 = vxpose.xlu0.b32.cont [7/16] 0.0, 128
    %2083 = vxpose.xlu0.b32.cont [8/16] 0.0, 128
    %2084 = vxpose.xlu0.b32.cont [9/16] 0.0, 128
    %2085 = vxpose.xlu0.b32.cont [10/16] 0.0, 128
    %2086 = vxpose.xlu0.b32.cont [11/16] 0.0, 128
    %2087 = vxpose.xlu0.b32.cont [12/16] 0.0, 128
    %2088 = vxpose.xlu0.b32.cont [13/16] 0.0, 128
    %2089 = vxpose.xlu0.b32.cont [14/16] 0.0, 128
    %2090 = vxpose.xlu0.b32.cont [15/16] 0.0, 128
    %2091 = vxpose.xlu0.b32.end [16/16] 0.0, 128
    %v2092 = vpop.trf.xlu0
    %v2093 = vpop.trf.xlu0
    %v2094 = vpop.trf.xlu0
    %v2095 = vpop.trf.xlu0
    %v2096 = vpop.trf.xlu0
    %v2097 = vpop.trf.xlu0
    %v2098 = vpop.trf.xlu0
    %v2099 = vpop.trf.xlu0
    %v2100 = vpop.trf.xlu0
    %v2101 = vpop.trf.xlu0
    %v2102 = vpop.trf.xlu0
    %v2103 = vpop.trf.xlu0
    %v2104 = vpop.trf.xlu0
    %v2105 = vpop.trf.xlu0
    %v2106 = vpop.trf.xlu0
    %v2107 = vpop.trf.xlu0
    %2108 = vxpose.xlu0.b32.start [1/16] %v1908, 128
    %2109 = vxpose.xlu0.b32.cont [2/16] %v1909, 128
    %2110 = vxpose.xlu0.b32.cont [3/16] %v1910, 128
    %2111 = vxpose.xlu0.b32.cont [4/16] %v1911, 128
    %2112 = vxpose.xlu0.b32.cont [5/16] 0.0, 128
    %2113 = vxpose.xlu0.b32.cont [6/16] 0.0, 128
    %2114 = vxpose.xlu0.b32.cont [7/16] 0.0, 128
    %2115 = vxpose.xlu0.b32.cont [8/16] 0.0, 128
    %2116 = vxpose.xlu0.b32.cont [9/16] 0.0, 128
    %2117 = vxpose.xlu0.b32.cont [10/16] 0.0, 128
    %2118 = vxpose.xlu0.b32.cont [11/16] 0.0, 128
    %2119 = vxpose.xlu0.b32.cont [12/16] 0.0, 128
    %2120 = vxpose.xlu0.b32.cont [13/16] 0.0, 128
    %2121 = vxpose.xlu0.b32.cont [14/16] 0.0, 128
    %2122 = vxpose.xlu0.b32.cont [15/16] 0.0, 128
    %2123 = vxpose.xlu0.b32.end [16/16] 0.0, 128
    %v2124 = vpop.trf.xlu0
    %v2125 = vpop.trf.xlu0
    %v2126 = vpop.trf.xlu0
    %v2127 = vpop.trf.xlu0
    %v2128 = vpop.trf.xlu0
    %v2129 = vpop.trf.xlu0
    %v2130 = vpop.trf.xlu0
    %v2131 = vpop.trf.xlu0
    %v2132 = vpop.trf.xlu0
    %v2133 = vpop.trf.xlu0
    %v2134 = vpop.trf.xlu0
    %v2135 = vpop.trf.xlu0
    %v2136 = vpop.trf.xlu0
    %v2137 = vpop.trf.xlu0
    %v2138 = vpop.trf.xlu0
    %v2139 = vpop.trf.xlu0
    %2140 = vxpose.xlu0.b32.start [1/16] %v1912, 128
    %2141 = vxpose.xlu0.b32.cont [2/16] %v1913, 128
    %2142 = vxpose.xlu0.b32.cont [3/16] %v1914, 128
    %2143 = vxpose.xlu0.b32.cont [4/16] %v1915, 128
    %2144 = vxpose.xlu0.b32.cont [5/16] 0.0, 128
    %2145 = vxpose.xlu0.b32.cont [6/16] 0.0, 128
    %2146 = vxpose.xlu0.b32.cont [7/16] 0.0, 128
    %2147 = vxpose.xlu0.b32.cont [8/16] 0.0, 128
    %2148 = vxpose.xlu0.b32.cont [9/16] 0.0, 128
    %2149 = vxpose.xlu0.b32.cont [10/16] 0.0, 128
    %2150 = vxpose.xlu0.b32.cont [11/16] 0.0, 128
    %2151 = vxpose.xlu0.b32.cont [12/16] 0.0, 128
    %2152 = vxpose.xlu0.b32.cont [13/16] 0.0, 128
    %2153 = vxpose.xlu0.b32.cont [14/16] 0.0, 128
    %2154 = vxpose.xlu0.b32.cont [15/16] 0.0, 128
    %2155 = vxpose.xlu0.b32.end [16/16] 0.0, 128
    %v2156 = vpop.trf.xlu0
    %v2157 = vpop.trf.xlu0
    %v2158 = vpop.trf.xlu0
    %v2159 = vpop.trf.xlu0
    %v2160 = vpop.trf.xlu0
    %v2161 = vpop.trf.xlu0
    %v2162 = vpop.trf.xlu0
    %v2163 = vpop.trf.xlu0
    %v2164 = vpop.trf.xlu0
    %v2165 = vpop.trf.xlu0
    %v2166 = vpop.trf.xlu0
    %v2167 = vpop.trf.xlu0
    %v2168 = vpop.trf.xlu0
    %v2169 = vpop.trf.xlu0
    %v2170 = vpop.trf.xlu0
    %v2171 = vpop.trf.xlu0
    %2172 = vst.msk [vmem:[%s2] sm:$0xff] %vm33, %v1932
    %2173 = vst.msk [vmem:[%s2 + $0x8] sm:$0xff] %vm33, %v1964
    %2174 = vst.msk [vmem:[%s2 + $0x10] sm:$0xff] %vm33, %v1996
    %2175 = vst.msk [vmem:[%s2 + $0x18] sm:$0xff] %vm33, %v2028
    %2176 = vst.msk [vmem:[%s2 + $0x20] sm:$0xff] %vm33, %v2060
    %2177 = vst.msk [vmem:[%s2 + $0x28] sm:$0xff] %vm33, %v2092
    %2178 = vst.msk [vmem:[%s2 + $0x30] sm:$0xff] %vm33, %v2124
    %2179 = vst.msk [vmem:[%s2 + $0x38] sm:$0xff] %vm33, %v2156
    // Predicated region
    $region14: #{autoencoder_forward.1} parent=1 // pred_check
      _
    $region15: #{autoencoder_forward.1} parent=1 // pred_check_branch
      %2181 = sbr.rel (0) target = $region17
    $region16: #{autoencoder_forward.1} parent=1 // pred_region
      _
    $region17: #{autoencoder_forward.1} parent=1 // pred_fallthru
      _
    // Predicated region
    $region18: #{autoencoder_forward.1} parent=1 // pred_check
      _
    $region19: #{autoencoder_forward.1} parent=1 // pred_check_branch
      %2183 = sbr.rel (0) target = $region21
    $region20: #{autoencoder_forward.1} parent=1 // pred_region
      _
    $region21: #{autoencoder_forward.1} parent=1 // pred_fallthru
      _
    %2184 = vsyncpa [#allocation3], 1

</llo_original>
